<compile_context>
chip_gen: v7x
topology: tpu7x:2x2x1
jax: 0.10.0
libtpu: 0.0.40
codegen_flags: <defaults>
</compile_context>

<pallas_src>
import functools
import math

import jax
import jax.numpy as jnp
from jax import lax
from jax.experimental import pallas as pl
from jax.experimental.pallas import tpu as pltpu

KSIZE = 7
PAD = (KSIZE - 1) // 2           # 3
KK = KSIZE * KSIZE

_STRIP_UNROLL_LIMIT = 8          # python-unroll strip loop up to this many strips
_C_UNROLL_LIMIT = 64             # python-unroll channel loops up to this many channels
_REG_BUDGET_BYTES = 160 * 1024   # target live-set for the conv stage (vreg file is 256 KiB)


def _round_up(x, m):
    return (x + m - 1) // m * m


def _tpu_caps():
    """(VMEM capacity bytes, #TensorCores per chip) with conservative fallbacks."""
    vmem = 64 << 20   # conservative default (v7x per-core VMEM)
    n_tc = 1
    try:
        info = pltpu.get_tpu_info()
        vmem = int(getattr(info, "vmem_capacity_bytes", vmem))
    except Exception:
        pass
    try:
        kind = jax.devices()[0].device_kind.lower()
        if "v7" in kind:
            n_tc = 2
    except Exception:
        pass
    if vmem <= (64 << 20):        # 64 MiB/TC parts are the 2-TensorCore generation
        n_tc = max(n_tc, 2)
    return vmem, n_tc


def _pick_batch_block(B, per_batch_bytes, target_bytes, min_steps):
    """Largest divisor of B whose block fits `target_bytes` while keeping at least
    `min_steps` grid steps (megacore balance / pipeline depth); fall back to the
    largest fitting divisor if the step constraint cannot be met."""
    best = None
    for d in range(1, B + 1):
        if B % d:
            continue
        if d * per_batch_bytes > target_bytes:
            continue
        if (B // d) >= min_steps:
            best = d
    if best is None:
        for d in range(1, B + 1):
            if B % d == 0 and d * per_batch_bytes <= target_bytes:
                best = d
    return best if best is not None else 1


def _spatial_attention_kernel(w_ref, x_ref, o_ref, pad_ref, *, C, H, W, S, Lp, Bblk, bs):
    """
    w_ref   : SMEM (2*K*K,) f32, flattened OIHW conv weight, order [ch, kh, kw]
    x_ref   : VMEM (Bblk, C, H*W) input dtype (lane-dense)
    o_ref   : VMEM (Bblk, C, H*W) output dtype (lane-dense)
    pad_ref : VMEM scratch (2, bs, Lp) f32 -- compact zero-gapped flat planes.

    Flat layout: image pixel (r, c) lives at lane r*S + c with S = W + PAD.
    Lanes [r*S + W, (r+1)*S) are the per-row zero gaps; lanes [H*S - PAD, Lp)
    are the shared top/bottom zero pad (the lane rolls are circular, so the tail
    also serves as the "above image" padding).  Only data lanes are ever written,
    so the zero lanes stay valid across strips and grid steps.
    """
    HW = H * W
    n_full = Bblk // bs
    rem = Bblk - n_full * bs
    c_python = (C <= _C_UNROLL_LIMIT)

    # Zero the (strip-sized) scratch once per grid step.  This is only a few
    # vector stores (the scratch is tied to the strip size, not the block size),
    # and -- unlike a program_id==0 init -- it is safe when the batch grid axis is
    # split across the two TensorCores of a v7x megacore.
    pad_ref[...] = jnp.zeros_like(pad_ref)

    def process_strip(s0, cur):
        # ---- fused channel reduce: running sum + running max (lane-dense) ------
        x0 = x_ref[pl.ds(s0, cur), 0, :].astype(jnp.float32)          # (cur, HW)
        if c_python:
            s_acc, m_acc = x0, x0
            for c in range(1, C):
                xc = x_ref[pl.ds(s0, cur), c, :].astype(jnp.float32)
                s_acc = s_acc + xc
                m_acc = jnp.maximum(m_acc, xc)
        else:
            def red_body(c, carry):
                sa, ma = carry
                xc = x_ref[pl.ds(s0, cur), c, :].astype(jnp.float32)
                return sa + xc, jnp.maximum(ma, xc)
            s_acc, m_acc = lax.fori_loop(1, C, red_body, (x0, x0))
        avg = s_acc * jnp.float32(1.0 / C)

        # ---- scatter avg/max rows into the compact padded-flat scratch ---------
        # Only data lanes are written; the gap / tail lanes stay zero so the
        # circular lane rolls below read zeros for every out-of-image tap.
        for ch, src in ((0, avg), (1, m_acc)):
            for r in range(H):
                pad_ref[ch, 0:cur, r * S:r * S + W] = src[:, r * W:r * W + W]

        # ---- 7x7 conv (2 -> 1 channels) in the flat layout ---------------------
        #   out[i] = sum_kw t_kw[i + kw - PAD]
        #   t_kw   = sum_{ch,kh} w[ch,kh,kw] * plane_ch[i + (kh-PAD)*S]
        # => 12 "row" rolls + 6 final rolls on the XLU, 98 FMAs on the VPU,
        #    no sublane-misaligned slicing, bounded live set (<= ~10 planes).
        t = [None] * KSIZE
        for ch in range(2):
            plane = pad_ref[ch, 0:cur, :]                              # (cur, Lp)
            for kh in range(KSIZE):
                sh = ((PAD - kh) * S) % Lp
                q = plane if sh == 0 else pltpu.roll(plane, shift=sh, axis=1)
                for kw in range(KSIZE):
                    wv = w_ref[ch * KK + kh * KSIZE + kw]
                    t[kw] = wv * q if t[kw] is None else t[kw] + wv * q
        acc = None
        for kw in range(KSIZE):
            sh = (PAD - kw) % Lp
            tk = t[kw] if sh == 0 else pltpu.roll(t[kw], shift=sh, axis=1)
            acc = tk if acc is None else acc + tk

        # ---- gather gate rows back to the lane-dense (cur, HW) layout ----------
        gate = jax.nn.sigmoid(
            jnp.concatenate([acc[:, r * S:r * S + W] for r in range(H)], axis=1))

        # ---- gating: per-channel, f32 math, cast only at the (lane-dense) store --
        if c_python:
            for c in range(C):
                xc = x_ref[pl.ds(s0, cur), c, :].astype(jnp.float32)
                o_ref[pl.ds(s0, cur), c, :] = (gate * xc).astype(o_ref.dtype)
        else:
            @pl.loop(0, C)
            def _(c):
                xc = x_ref[pl.ds(s0, cur), c, :].astype(jnp.float32)
                o_ref[pl.ds(s0, cur), c, :] = (gate * xc).astype(o_ref.dtype)

    # ---- strip loop over the batch block ---------------------------------------
    if n_full <= _STRIP_UNROLL_LIMIT:
        for i in range(n_full):
            process_strip(i * bs, bs)
    else:
        @pl.loop(0, n_full)
        def _(i):
            process_strip(i * bs, bs)
    if rem:
        process_strip(n_full * bs, rem)


def spatial_attention(x, conv_weight):
    """x: (B, C, H, W); conv_weight: (1, 2, K, K) in PyTorch OIHW layout."""
    B, C, H, W = x.shape
    HW = H * W
    S = W + PAD                                   # flat row stride (W data + PAD zeros)
    Lp = _round_up((H + PAD) * S, 128)            # flat plane length incl. shared pad

    itemsize = jnp.dtype(x.dtype).itemsize
    per_batch = C * HW * itemsize

    # ---- generation-aware sizing -------------------------------------------------
    vmem_cap, n_tc = _tpu_caps()
    target_block = (8 << 20) if vmem_cap >= (100 << 20) else (3 << 20)
    min_steps = 2 * max(n_tc, 1)                  # >=4 steps on 2-TensorCore parts
    Bblk = _pick_batch_block(B, per_batch, target_block, min_steps)
    grid = (B // Bblk,)

    # Strip size: keep the conv live set (~7 accumulators + plane + rolled + gate)
    # inside the vreg file.
    live_planes = KSIZE + 5
    bs = max(1, min(Bblk, 8, _REG_BUDGET_BYTES // (live_planes * Lp * 4)))

    # ---- VMEM budget / feasibility ------------------------------------------------
    block_bytes = Bblk * per_batch
    scratch_bytes = 2 * bs * Lp * 4
    need = 4 * block_bytes + scratch_bytes + (2 << 20)       # dbl-buffered in+out + slack
    limit_cap = int(vmem_cap * 3 // 4)                        # leave headroom (esp. v7x)
    if need > limit_cap:
        raise ValueError(
            "SpatialAttention pallas kernel: a single-batch block "
            f"({per_batch / 2**20:.1f} MiB/batch) does not fit the VMEM budget "
            f"({limit_cap / 2**20:.0f} MiB); C/H tiling is not implemented for "
            "feature maps this large.")
    vmem_limit = int(min(max(2 * need, 16 << 20), limit_cap))

    w_flat = conv_weight.reshape(-1).astype(jnp.float32)      # (2*K*K,), [ch, kh, kw]
    x_flat = x.reshape(B, C, HW)                              # lane-dense view for the kernel

    kernel = functools.partial(
        _spatial_attention_kernel, C=C, H=H, W=W, S=S, Lp=Lp, Bblk=Bblk, bs=bs)

    cost = pl.CostEstimate(
        flops=B * HW * (2 * C + 2 * 2 * KK + C),              # reduce + conv + gating
        transcendentals=B * HW,                               # sigmoid
        bytes_accessed=2 * B * C * HW * itemsize + w_flat.size * 4,
    )

    out_flat = pl.pallas_call(
        kernel,
        out_shape=jax.ShapeDtypeStruct((B, C, HW), x.dtype),
        grid=grid,
        in_specs=[
            pl.BlockSpec(memory_space=pltpu.MemorySpace.SMEM),           # conv weights
            pl.BlockSpec((Bblk, C, HW), lambda b: (b, 0, 0)),            # x batch block
        ],
        out_specs=pl.BlockSpec((Bblk, C, HW), lambda b: (b, 0, 0)),
        scratch_shapes=[pltpu.VMEM((2, bs, Lp), jnp.float32)],
        compiler_params=pltpu.CompilerParams(
            dimension_semantics=("parallel",),
            vmem_limit_bytes=vmem_limit,
        ),
        cost_estimate=cost,
    )(w_flat, x_flat)

    return out_flat.reshape(B, C, H, W)


def spatial_attention_reference(x, conv_weight):
    avg = jnp.mean(x, axis=1, keepdims=True)
    mx = jnp.max(x, axis=1, keepdims=True)
    out = jnp.concatenate([avg, mx], axis=1)
    conv = lax.conv_general_dilated(
        out, conv_weight, window_strides=(1, 1),
        padding=[(PAD, PAD), (PAD, PAD)],
        dimension_numbers=("NCHW", "OIHW", "NCHW"))
    return jax.nn.sigmoid(conv) * x


if __name__ == "__main__":
    key = jax.random.PRNGKey(0)
    kx, kw = jax.random.split(key)

    B, C, H, W = 2, 4, 16, 16
    x = jax.random.normal(kx, (B, C, H, W), dtype=jnp.float32)

    # PyTorch Conv2d default init (kaiming uniform, a=sqrt(5)): bound = 1/sqrt(fan_in)
    fan_in = 2 * KSIZE * KSIZE
    bound = 1.0 / math.sqrt(fan_in)
    conv_weight = jax.random.uniform(
        kw, (1, 2, KSIZE, KSIZE), dtype=jnp.float32, minval=-bound, maxval=bound)

    out = jax.block_until_ready(spatial_attention(x, conv_weight))

    ref = spatial_attention_reference(x, conv_weight)
    assert out.shape == (B, C, H, W)
    assert jnp.allclose(out, ref, rtol=1e-4, atol=1e-5), "mismatch vs JAX reference"

    print("KERNEL_OK")
</pallas_src>

<mosaic_0001>
module attributes {stable_mosaic.version = 11 : i64} {
  func.func @_spatial_attention_kernel(%arg0: i32, %arg1: memref<98xf32, #tpu.memory_space<smem>>, %arg2: memref<2x4x256xf32, #tpu.memory_space<vmem>>, %arg3: memref<2x4x256xf32, #tpu.memory_space<vmem>>, %arg4: memref<2x2x384xf32, #tpu.memory_space<vmem>>) attributes {dimension_semantics = [#tpu.dimension_semantics<parallel>], iteration_bounds = array<i64: 1>, scalar_prefetch = 0 : i64, scratch_operands = 1 : i64, tpu.core_type = #tpu.core_type<tc>, window_params = [{transform_indices = @transform_0, window_bounds = array<i64: 98>}, {transform_indices = @transform_1, window_bounds = array<i64: 2, 4, 256>}, {transform_indices = @transform_2, window_bounds = array<i64: 2, 4, 256>}]} {
    %cst = arith.constant 0.000000e+00 : f32
    %0 = vector.broadcast %cst : f32 to vector<2x2x384xf32>
    %c0 = arith.constant 0 : index
    %c0_0 = arith.constant 0 : index
    %c0_1 = arith.constant 0 : index
    %1 = vector.load %arg4[%c0, %c0_0, %c0_1] : memref<2x2x384xf32, #tpu.memory_space<vmem>>, vector<2x2x384xf32>
    tpu.vector_store %arg4[%c0, %c0_0, %c0_1], %0 {strides = array<i32>} : memref<2x2x384xf32, #tpu.memory_space<vmem>>, vector<2x2x384xf32>,
    %c0_2 = arith.constant 0 : index
    %c0_3 = arith.constant 0 : index
    %c0_4 = arith.constant 0 : index
    %2 = vector.load %arg2[%c0_2, %c0_3, %c0_4] : memref<2x4x256xf32, #tpu.memory_space<vmem>>, vector<2x1x256xf32>
    %3 = vector.shape_cast %2 : vector<2x1x256xf32> to vector<2x256xf32>
    %c0_5 = arith.constant 0 : index
    %c1 = arith.constant 1 : index
    %c0_6 = arith.constant 0 : index
    %4 = vector.load %arg2[%c0_5, %c1, %c0_6] : memref<2x4x256xf32, #tpu.memory_space<vmem>>, vector<2x1x256xf32>
    %5 = vector.shape_cast %4 : vector<2x1x256xf32> to vector<2x256xf32>
    %6 = arith.addf %3, %5 : vector<2x256xf32>
    %7 = arith.maximumf %3, %5 : vector<2x256xf32>
    %c0_7 = arith.constant 0 : index
    %c2 = arith.constant 2 : index
    %c0_8 = arith.constant 0 : index
    %8 = vector.load %arg2[%c0_7, %c2, %c0_8] : memref<2x4x256xf32, #tpu.memory_space<vmem>>, vector<2x1x256xf32>
    %9 = vector.shape_cast %8 : vector<2x1x256xf32> to vector<2x256xf32>
    %10 = arith.addf %6, %9 : vector<2x256xf32>
    %11 = arith.maximumf %7, %9 : vector<2x256xf32>
    %c0_9 = arith.constant 0 : index
    %c3 = arith.constant 3 : index
    %c0_10 = arith.constant 0 : index
    %12 = vector.load %arg2[%c0_9, %c3, %c0_10] : memref<2x4x256xf32, #tpu.memory_space<vmem>>, vector<2x1x256xf32>
    %13 = vector.shape_cast %12 : vector<2x1x256xf32> to vector<2x256xf32>
    %14 = arith.addf %10, %13 : vector<2x256xf32>
    %15 = arith.maximumf %11, %13 : vector<2x256xf32>
    %cst_11 = arith.constant 2.500000e-01 : f32
    %16 = vector.broadcast %cst_11 : f32 to vector<2x256xf32>
    %17 = arith.mulf %14, %16 : vector<2x256xf32>
    %18 = vector.extract_strided_slice %17 {offsets = [0, 0], sizes = [2, 16], strides = [1, 1]} : vector<2x256xf32> to vector<2x16xf32>
    %c0_12 = arith.constant 0 : index
    %c0_13 = arith.constant 0 : index
    %c0_14 = arith.constant 0 : index
    %19 = vector.load %arg4[%c0_12, %c0_13, %c0_14] : memref<2x2x384xf32, #tpu.memory_space<vmem>>, vector<1x2x16xf32>
    %20 = vector.shape_cast %19 : vector<1x2x16xf32> to vector<2x16xf32>
    %21 = vector.shape_cast %18 : vector<2x16xf32> to vector<1x2x16xf32>
    tpu.vector_store %arg4[%c0_12, %c0_13, %c0_14], %21 {strides = array<i32>} : memref<2x2x384xf32, #tpu.memory_space<vmem>>, vector<1x2x16xf32>,
    %22 = vector.extract_strided_slice %17 {offsets = [0, 16], sizes = [2, 16], strides = [1, 1]} : vector<2x256xf32> to vector<2x16xf32>
    %c0_15 = arith.constant 0 : index
    %c0_16 = arith.constant 0 : index
    %c19 = arith.constant 19 : index
    %23 = vector.load %arg4[%c0_15, %c0_16, %c19] : memref<2x2x384xf32, #tpu.memory_space<vmem>>, vector<1x2x16xf32>
    %24 = vector.shape_cast %23 : vector<1x2x16xf32> to vector<2x16xf32>
    %25 = vector.shape_cast %22 : vector<2x16xf32> to vector<1x2x16xf32>
    tpu.vector_store %arg4[%c0_15, %c0_16, %c19], %25 {strides = array<i32>} : memref<2x2x384xf32, #tpu.memory_space<vmem>>, vector<1x2x16xf32>,
    %26 = vector.extract_strided_slice %17 {offsets = [0, 32], sizes = [2, 16], strides = [1, 1]} : vector<2x256xf32> to vector<2x16xf32>
    %c0_17 = arith.constant 0 : index
    %c0_18 = arith.constant 0 : index
    %c38 = arith.constant 38 : index
    %27 = vector.load %arg4[%c0_17, %c0_18, %c38] : memref<2x2x384xf32, #tpu.memory_space<vmem>>, vector<1x2x16xf32>
    %28 = vector.shape_cast %27 : vector<1x2x16xf32> to vector<2x16xf32>
    %29 = vector.shape_cast %26 : vector<2x16xf32> to vector<1x2x16xf32>
    tpu.vector_store %arg4[%c0_17, %c0_18, %c38], %29 {strides = array<i32>} : memref<2x2x384xf32, #tpu.memory_space<vmem>>, vector<1x2x16xf32>,
    %30 = vector.extract_strided_slice %17 {offsets = [0, 48], sizes = [2, 16], strides = [1, 1]} : vector<2x256xf32> to vector<2x16xf32>
    %c0_19 = arith.constant 0 : index
    %c0_20 = arith.constant 0 : index
    %c57 = arith.constant 57 : index
    %31 = vector.load %arg4[%c0_19, %c0_20, %c57] : memref<2x2x384xf32, #tpu.memory_space<vmem>>, vector<1x2x16xf32>
    %32 = vector.shape_cast %31 : vector<1x2x16xf32> to vector<2x16xf32>
    %33 = vector.shape_cast %30 : vector<2x16xf32> to vector<1x2x16xf32>
    tpu.vector_store %arg4[%c0_19, %c0_20, %c57], %33 {strides = array<i32>} : memref<2x2x384xf32, #tpu.memory_space<vmem>>, vector<1x2x16xf32>,
    %34 = vector.extract_strided_slice %17 {offsets = [0, 64], sizes = [2, 16], strides = [1, 1]} : vector<2x256xf32> to vector<2x16xf32>
    %c0_21 = arith.constant 0 : index
    %c0_22 = arith.constant 0 : index
    %c76 = arith.constant 76 : index
    %35 = vector.load %arg4[%c0_21, %c0_22, %c76] : memref<2x2x384xf32, #tpu.memory_space<vmem>>, vector<1x2x16xf32>
    %36 = vector.shape_cast %35 : vector<1x2x16xf32> to vector<2x16xf32>
    %37 = vector.shape_cast %34 : vector<2x16xf32> to vector<1x2x16xf32>
    tpu.vector_store %arg4[%c0_21, %c0_22, %c76], %37 {strides = array<i32>} : memref<2x2x384xf32, #tpu.memory_space<vmem>>, vector<1x2x16xf32>,
    %38 = vector.extract_strided_slice %17 {offsets = [0, 80], sizes = [2, 16], strides = [1, 1]} : vector<2x256xf32> to vector<2x16xf32>
    %c0_23 = arith.constant 0 : index
    %c0_24 = arith.constant 0 : index
    %c95 = arith.constant 95 : index
    %39 = vector.load %arg4[%c0_23, %c0_24, %c95] : memref<2x2x384xf32, #tpu.memory_space<vmem>>, vector<1x2x16xf32>
    %40 = vector.shape_cast %39 : vector<1x2x16xf32> to vector<2x16xf32>
    %41 = vector.shape_cast %38 : vector<2x16xf32> to vector<1x2x16xf32>
    tpu.vector_store %arg4[%c0_23, %c0_24, %c95], %41 {strides = array<i32>} : memref<2x2x384xf32, #tpu.memory_space<vmem>>, vector<1x2x16xf32>,
    %42 = vector.extract_strided_slice %17 {offsets = [0, 96], sizes = [2, 16], strides = [1, 1]} : vector<2x256xf32> to vector<2x16xf32>
    %c0_25 = arith.constant 0 : index
    %c0_26 = arith.constant 0 : index
    %c114 = arith.constant 114 : index
    %43 = vector.load %arg4[%c0_25, %c0_26, %c114] : memref<2x2x384xf32, #tpu.memory_space<vmem>>, vector<1x2x16xf32>
    %44 = vector.shape_cast %43 : vector<1x2x16xf32> to vector<2x16xf32>
    %45 = vector.shape_cast %42 : vector<2x16xf32> to vector<1x2x16xf32>
    tpu.vector_store %arg4[%c0_25, %c0_26, %c114], %45 {strides = array<i32>} : memref<2x2x384xf32, #tpu.memory_space<vmem>>, vector<1x2x16xf32>,
    %46 = vector.extract_strided_slice %17 {offsets = [0, 112], sizes = [2, 16], strides = [1, 1]} : vector<2x256xf32> to vector<2x16xf32>
    %c0_27 = arith.constant 0 : index
    %c0_28 = arith.constant 0 : index
    %c133 = arith.constant 133 : index
    %47 = vector.load %arg4[%c0_27, %c0_28, %c133] : memref<2x2x384xf32, #tpu.memory_space<vmem>>, vector<1x2x16xf32>
    %48 = vector.shape_cast %47 : vector<1x2x16xf32> to vector<2x16xf32>
    %49 = vector.shape_cast %46 : vector<2x16xf32> to vector<1x2x16xf32>
    tpu.vector_store %arg4[%c0_27, %c0_28, %c133], %49 {strides = array<i32>} : memref<2x2x384xf32, #tpu.memory_space<vmem>>, vector<1x2x16xf32>,
    %50 = vector.extract_strided_slice %17 {offsets = [0, 128], sizes = [2, 16], strides = [1, 1]} : vector<2x256xf32> to vector<2x16xf32>
    %c0_29 = arith.constant 0 : index
    %c0_30 = arith.constant 0 : index
    %c152 = arith.constant 152 : index
    %51 = vector.load %arg4[%c0_29, %c0_30, %c152] : memref<2x2x384xf32, #tpu.memory_space<vmem>>, vector<1x2x16xf32>
    %52 = vector.shape_cast %51 : vector<1x2x16xf32> to vector<2x16xf32>
    %53 = vector.shape_cast %50 : vector<2x16xf32> to vector<1x2x16xf32>
    tpu.vector_store %arg4[%c0_29, %c0_30, %c152], %53 {strides = array<i32>} : memref<2x2x384xf32, #tpu.memory_space<vmem>>, vector<1x2x16xf32>,
    %54 = vector.extract_strided_slice %17 {offsets = [0, 144], sizes = [2, 16], strides = [1, 1]} : vector<2x256xf32> to vector<2x16xf32>
    %c0_31 = arith.constant 0 : index
    %c0_32 = arith.constant 0 : index
    %c171 = arith.constant 171 : index
    %55 = vector.load %arg4[%c0_31, %c0_32, %c171] : memref<2x2x384xf32, #tpu.memory_space<vmem>>, vector<1x2x16xf32>
    %56 = vector.shape_cast %55 : vector<1x2x16xf32> to vector<2x16xf32>
    %57 = vector.shape_cast %54 : vector<2x16xf32> to vector<1x2x16xf32>
    tpu.vector_store %arg4[%c0_31, %c0_32, %c171], %57 {strides = array<i32>} : memref<2x2x384xf32, #tpu.memory_space<vmem>>, vector<1x2x16xf32>,
    %58 = vector.extract_strided_slice %17 {offsets = [0, 160], sizes = [2, 16], strides = [1, 1]} : vector<2x256xf32> to vector<2x16xf32>
    %c0_33 = arith.constant 0 : index
    %c0_34 = arith.constant 0 : index
    %c190 = arith.constant 190 : index
    %59 = vector.load %arg4[%c0_33, %c0_34, %c190] : memref<2x2x384xf32, #tpu.memory_space<vmem>>, vector<1x2x16xf32>
    %60 = vector.shape_cast %59 : vector<1x2x16xf32> to vector<2x16xf32>
    %61 = vector.shape_cast %58 : vector<2x16xf32> to vector<1x2x16xf32>
    tpu.vector_store %arg4[%c0_33, %c0_34, %c190], %61 {strides = array<i32>} : memref<2x2x384xf32, #tpu.memory_space<vmem>>, vector<1x2x16xf32>,
    %62 = vector.extract_strided_slice %17 {offsets = [0, 176], sizes = [2, 16], strides = [1, 1]} : vector<2x256xf32> to vector<2x16xf32>
    %c0_35 = arith.constant 0 : index
    %c0_36 = arith.constant 0 : index
    %c209 = arith.constant 209 : index
    %63 = vector.load %arg4[%c0_35, %c0_36, %c209] : memref<2x2x384xf32, #tpu.memory_space<vmem>>, vector<1x2x16xf32>
    %64 = vector.shape_cast %63 : vector<1x2x16xf32> to vector<2x16xf32>
    %65 = vector.shape_cast %62 : vector<2x16xf32> to vector<1x2x16xf32>
    tpu.vector_store %arg4[%c0_35, %c0_36, %c209], %65 {strides = array<i32>} : memref<2x2x384xf32, #tpu.memory_space<vmem>>, vector<1x2x16xf32>,
    %66 = vector.extract_strided_slice %17 {offsets = [0, 192], sizes = [2, 16], strides = [1, 1]} : vector<2x256xf32> to vector<2x16xf32>
    %c0_37 = arith.constant 0 : index
    %c0_38 = arith.constant 0 : index
    %c228 = arith.constant 228 : index
    %67 = vector.load %arg4[%c0_37, %c0_38, %c228] : memref<2x2x384xf32, #tpu.memory_space<vmem>>, vector<1x2x16xf32>
    %68 = vector.shape_cast %67 : vector<1x2x16xf32> to vector<2x16xf32>
    %69 = vector.shape_cast %66 : vector<2x16xf32> to vector<1x2x16xf32>
    tpu.vector_store %arg4[%c0_37, %c0_38, %c228], %69 {strides = array<i32>} : memref<2x2x384xf32, #tpu.memory_space<vmem>>, vector<1x2x16xf32>,
    %70 = vector.extract_strided_slice %17 {offsets = [0, 208], sizes = [2, 16], strides = [1, 1]} : vector<2x256xf32> to vector<2x16xf32>
    %c0_39 = arith.constant 0 : index
    %c0_40 = arith.constant 0 : index
    %c247 = arith.constant 247 : index
    %71 = vector.load %arg4[%c0_39, %c0_40, %c247] : memref<2x2x384xf32, #tpu.memory_space<vmem>>, vector<1x2x16xf32>
    %72 = vector.shape_cast %71 : vector<1x2x16xf32> to vector<2x16xf32>
    %73 = vector.shape_cast %70 : vector<2x16xf32> to vector<1x2x16xf32>
    tpu.vector_store %arg4[%c0_39, %c0_40, %c247], %73 {strides = array<i32>} : memref<2x2x384xf32, #tpu.memory_space<vmem>>, vector<1x2x16xf32>,
    %74 = vector.extract_strided_slice %17 {offsets = [0, 224], sizes = [2, 16], strides = [1, 1]} : vector<2x256xf32> to vector<2x16xf32>
    %c0_41 = arith.constant 0 : index
    %c0_42 = arith.constant 0 : index
    %c266 = arith.constant 266 : index
    %75 = vector.load %arg4[%c0_41, %c0_42, %c266] : memref<2x2x384xf32, #tpu.memory_space<vmem>>, vector<1x2x16xf32>
    %76 = vector.shape_cast %75 : vector<1x2x16xf32> to vector<2x16xf32>
    %77 = vector.shape_cast %74 : vector<2x16xf32> to vector<1x2x16xf32>
    tpu.vector_store %arg4[%c0_41, %c0_42, %c266], %77 {strides = array<i32>} : memref<2x2x384xf32, #tpu.memory_space<vmem>>, vector<1x2x16xf32>,
    %78 = vector.extract_strided_slice %17 {offsets = [0, 240], sizes = [2, 16], strides = [1, 1]} : vector<2x256xf32> to vector<2x16xf32>
    %c0_43 = arith.constant 0 : index
    %c0_44 = arith.constant 0 : index
    %c285 = arith.constant 285 : index
    %79 = vector.load %arg4[%c0_43, %c0_44, %c285] : memref<2x2x384xf32, #tpu.memory_space<vmem>>, vector<1x2x16xf32>
    %80 = vector.shape_cast %79 : vector<1x2x16xf32> to vector<2x16xf32>
    %81 = vector.shape_cast %78 : vector<2x16xf32> to vector<1x2x16xf32>
    tpu.vector_store %arg4[%c0_43, %c0_44, %c285], %81 {strides = array<i32>} : memref<2x2x384xf32, #tpu.memory_space<vmem>>, vector<1x2x16xf32>,
    %82 = vector.extract_strided_slice %15 {offsets = [0, 0], sizes = [2, 16], strides = [1, 1]} : vector<2x256xf32> to vector<2x16xf32>
    %c1_45 = arith.constant 1 : index
    %c0_46 = arith.constant 0 : index
    %c0_47 = arith.constant 0 : index
    %83 = vector.load %arg4[%c1_45, %c0_46, %c0_47] : memref<2x2x384xf32, #tpu.memory_space<vmem>>, vector<1x2x16xf32>
    %84 = vector.shape_cast %83 : vector<1x2x16xf32> to vector<2x16xf32>
    %85 = vector.shape_cast %82 : vector<2x16xf32> to vector<1x2x16xf32>
    tpu.vector_store %arg4[%c1_45, %c0_46, %c0_47], %85 {strides = array<i32>} : memref<2x2x384xf32, #tpu.memory_space<vmem>>, vector<1x2x16xf32>,
    %86 = vector.extract_strided_slice %15 {offsets = [0, 16], sizes = [2, 16], strides = [1, 1]} : vector<2x256xf32> to vector<2x16xf32>
    %c1_48 = arith.constant 1 : index
    %c0_49 = arith.constant 0 : index
    %c19_50 = arith.constant 19 : index
    %87 = vector.load %arg4[%c1_48, %c0_49, %c19_50] : memref<2x2x384xf32, #tpu.memory_space<vmem>>, vector<1x2x16xf32>
    %88 = vector.shape_cast %87 : vector<1x2x16xf32> to vector<2x16xf32>
    %89 = vector.shape_cast %86 : vector<2x16xf32> to vector<1x2x16xf32>
    tpu.vector_store %arg4[%c1_48, %c0_49, %c19_50], %89 {strides = array<i32>} : memref<2x2x384xf32, #tpu.memory_space<vmem>>, vector<1x2x16xf32>,
    %90 = vector.extract_strided_slice %15 {offsets = [0, 32], sizes = [2, 16], strides = [1, 1]} : vector<2x256xf32> to vector<2x16xf32>
    %c1_51 = arith.constant 1 : index
    %c0_52 = arith.constant 0 : index
    %c38_53 = arith.constant 38 : index
    %91 = vector.load %arg4[%c1_51, %c0_52, %c38_53] : memref<2x2x384xf32, #tpu.memory_space<vmem>>, vector<1x2x16xf32>
    %92 = vector.shape_cast %91 : vector<1x2x16xf32> to vector<2x16xf32>
    %93 = vector.shape_cast %90 : vector<2x16xf32> to vector<1x2x16xf32>
    tpu.vector_store %arg4[%c1_51, %c0_52, %c38_53], %93 {strides = array<i32>} : memref<2x2x384xf32, #tpu.memory_space<vmem>>, vector<1x2x16xf32>,
    %94 = vector.extract_strided_slice %15 {offsets = [0, 48], sizes = [2, 16], strides = [1, 1]} : vector<2x256xf32> to vector<2x16xf32>
    %c1_54 = arith.constant 1 : index
    %c0_55 = arith.constant 0 : index
    %c57_56 = arith.constant 57 : index
    %95 = vector.load %arg4[%c1_54, %c0_55, %c57_56] : memref<2x2x384xf32, #tpu.memory_space<vmem>>, vector<1x2x16xf32>
    %96 = vector.shape_cast %95 : vector<1x2x16xf32> to vector<2x16xf32>
    %97 = vector.shape_cast %94 : vector<2x16xf32> to vector<1x2x16xf32>
    tpu.vector_store %arg4[%c1_54, %c0_55, %c57_56], %97 {strides = array<i32>} : memref<2x2x384xf32, #tpu.memory_space<vmem>>, vector<1x2x16xf32>,
    %98 = vector.extract_strided_slice %15 {offsets = [0, 64], sizes = [2, 16], strides = [1, 1]} : vector<2x256xf32> to vector<2x16xf32>
    %c1_57 = arith.constant 1 : index
    %c0_58 = arith.constant 0 : index
    %c76_59 = arith.constant 76 : index
    %99 = vector.load %arg4[%c1_57, %c0_58, %c76_59] : memref<2x2x384xf32, #tpu.memory_space<vmem>>, vector<1x2x16xf32>
    %100 = vector.shape_cast %99 : vector<1x2x16xf32> to vector<2x16xf32>
    %101 = vector.shape_cast %98 : vector<2x16xf32> to vector<1x2x16xf32>
    tpu.vector_store %arg4[%c1_57, %c0_58, %c76_59], %101 {strides = array<i32>} : memref<2x2x384xf32, #tpu.memory_space<vmem>>, vector<1x2x16xf32>,
    %102 = vector.extract_strided_slice %15 {offsets = [0, 80], sizes = [2, 16], strides = [1, 1]} : vector<2x256xf32> to vector<2x16xf32>
    %c1_60 = arith.constant 1 : index
    %c0_61 = arith.constant 0 : index
    %c95_62 = arith.constant 95 : index
    %103 = vector.load %arg4[%c1_60, %c0_61, %c95_62] : memref<2x2x384xf32, #tpu.memory_space<vmem>>, vector<1x2x16xf32>
    %104 = vector.shape_cast %103 : vector<1x2x16xf32> to vector<2x16xf32>
    %105 = vector.shape_cast %102 : vector<2x16xf32> to vector<1x2x16xf32>
    tpu.vector_store %arg4[%c1_60, %c0_61, %c95_62], %105 {strides = array<i32>} : memref<2x2x384xf32, #tpu.memory_space<vmem>>, vector<1x2x16xf32>,
    %106 = vector.extract_strided_slice %15 {offsets = [0, 96], sizes = [2, 16], strides = [1, 1]} : vector<2x256xf32> to vector<2x16xf32>
    %c1_63 = arith.constant 1 : index
    %c0_64 = arith.constant 0 : index
    %c114_65 = arith.constant 114 : index
    %107 = vector.load %arg4[%c1_63, %c0_64, %c114_65] : memref<2x2x384xf32, #tpu.memory_space<vmem>>, vector<1x2x16xf32>
    %108 = vector.shape_cast %107 : vector<1x2x16xf32> to vector<2x16xf32>
    %109 = vector.shape_cast %106 : vector<2x16xf32> to vector<1x2x16xf32>
    tpu.vector_store %arg4[%c1_63, %c0_64, %c114_65], %109 {strides = array<i32>} : memref<2x2x384xf32, #tpu.memory_space<vmem>>, vector<1x2x16xf32>,
    %110 = vector.extract_strided_slice %15 {offsets = [0, 112], sizes = [2, 16], strides = [1, 1]} : vector<2x256xf32> to vector<2x16xf32>
    %c1_66 = arith.constant 1 : index
    %c0_67 = arith.constant 0 : index
    %c133_68 = arith.constant 133 : index
    %111 = vector.load %arg4[%c1_66, %c0_67, %c133_68] : memref<2x2x384xf32, #tpu.memory_space<vmem>>, vector<1x2x16xf32>
    %112 = vector.shape_cast %111 : vector<1x2x16xf32> to vector<2x16xf32>
    %113 = vector.shape_cast %110 : vector<2x16xf32> to vector<1x2x16xf32>
    tpu.vector_store %arg4[%c1_66, %c0_67, %c133_68], %113 {strides = array<i32>} : memref<2x2x384xf32, #tpu.memory_space<vmem>>, vector<1x2x16xf32>,
    %114 = vector.extract_strided_slice %15 {offsets = [0, 128], sizes = [2, 16], strides = [1, 1]} : vector<2x256xf32> to vector<2x16xf32>
    %c1_69 = arith.constant 1 : index
    %c0_70 = arith.constant 0 : index
    %c152_71 = arith.constant 152 : index
    %115 = vector.load %arg4[%c1_69, %c0_70, %c152_71] : memref<2x2x384xf32, #tpu.memory_space<vmem>>, vector<1x2x16xf32>
    %116 = vector.shape_cast %115 : vector<1x2x16xf32> to vector<2x16xf32>
    %117 = vector.shape_cast %114 : vector<2x16xf32> to vector<1x2x16xf32>
    tpu.vector_store %arg4[%c1_69, %c0_70, %c152_71], %117 {strides = array<i32>} : memref<2x2x384xf32, #tpu.memory_space<vmem>>, vector<1x2x16xf32>,
    %118 = vector.extract_strided_slice %15 {offsets = [0, 144], sizes = [2, 16], strides = [1, 1]} : vector<2x256xf32> to vector<2x16xf32>
    %c1_72 = arith.constant 1 : index
    %c0_73 = arith.constant 0 : index
    %c171_74 = arith.constant 171 : index
    %119 = vector.load %arg4[%c1_72, %c0_73, %c171_74] : memref<2x2x384xf32, #tpu.memory_space<vmem>>, vector<1x2x16xf32>
    %120 = vector.shape_cast %119 : vector<1x2x16xf32> to vector<2x16xf32>
    %121 = vector.shape_cast %118 : vector<2x16xf32> to vector<1x2x16xf32>
    tpu.vector_store %arg4[%c1_72, %c0_73, %c171_74], %121 {strides = array<i32>} : memref<2x2x384xf32, #tpu.memory_space<vmem>>, vector<1x2x16xf32>,
    %122 = vector.extract_strided_slice %15 {offsets = [0, 160], sizes = [2, 16], strides = [1, 1]} : vector<2x256xf32> to vector<2x16xf32>
    %c1_75 = arith.constant 1 : index
    %c0_76 = arith.constant 0 : index
    %c190_77 = arith.constant 190 : index
    %123 = vector.load %arg4[%c1_75, %c0_76, %c190_77] : memref<2x2x384xf32, #tpu.memory_space<vmem>>, vector<1x2x16xf32>
    %124 = vector.shape_cast %123 : vector<1x2x16xf32> to vector<2x16xf32>
    %125 = vector.shape_cast %122 : vector<2x16xf32> to vector<1x2x16xf32>
    tpu.vector_store %arg4[%c1_75, %c0_76, %c190_77], %125 {strides = array<i32>} : memref<2x2x384xf32, #tpu.memory_space<vmem>>, vector<1x2x16xf32>,
    %126 = vector.extract_strided_slice %15 {offsets = [0, 176], sizes = [2, 16], strides = [1, 1]} : vector<2x256xf32> to vector<2x16xf32>
    %c1_78 = arith.constant 1 : index
    %c0_79 = arith.constant 0 : index
    %c209_80 = arith.constant 209 : index
    %127 = vector.load %arg4[%c1_78, %c0_79, %c209_80] : memref<2x2x384xf32, #tpu.memory_space<vmem>>, vector<1x2x16xf32>
    %128 = vector.shape_cast %127 : vector<1x2x16xf32> to vector<2x16xf32>
    %129 = vector.shape_cast %126 : vector<2x16xf32> to vector<1x2x16xf32>
    tpu.vector_store %arg4[%c1_78, %c0_79, %c209_80], %129 {strides = array<i32>} : memref<2x2x384xf32, #tpu.memory_space<vmem>>, vector<1x2x16xf32>,
    %130 = vector.extract_strided_slice %15 {offsets = [0, 192], sizes = [2, 16], strides = [1, 1]} : vector<2x256xf32> to vector<2x16xf32>
    %c1_81 = arith.constant 1 : index
    %c0_82 = arith.constant 0 : index
    %c228_83 = arith.constant 228 : index
    %131 = vector.load %arg4[%c1_81, %c0_82, %c228_83] : memref<2x2x384xf32, #tpu.memory_space<vmem>>, vector<1x2x16xf32>
    %132 = vector.shape_cast %131 : vector<1x2x16xf32> to vector<2x16xf32>
    %133 = vector.shape_cast %130 : vector<2x16xf32> to vector<1x2x16xf32>
    tpu.vector_store %arg4[%c1_81, %c0_82, %c228_83], %133 {strides = array<i32>} : memref<2x2x384xf32, #tpu.memory_space<vmem>>, vector<1x2x16xf32>,
    %134 = vector.extract_strided_slice %15 {offsets = [0, 208], sizes = [2, 16], strides = [1, 1]} : vector<2x256xf32> to vector<2x16xf32>
    %c1_84 = arith.constant 1 : index
    %c0_85 = arith.constant 0 : index
    %c247_86 = arith.constant 247 : index
    %135 = vector.load %arg4[%c1_84, %c0_85, %c247_86] : memref<2x2x384xf32, #tpu.memory_space<vmem>>, vector<1x2x16xf32>
    %136 = vector.shape_cast %135 : vector<1x2x16xf32> to vector<2x16xf32>
    %137 = vector.shape_cast %134 : vector<2x16xf32> to vector<1x2x16xf32>
    tpu.vector_store %arg4[%c1_84, %c0_85, %c247_86], %137 {strides = array<i32>} : memref<2x2x384xf32, #tpu.memory_space<vmem>>, vector<1x2x16xf32>,
    %138 = vector.extract_strided_slice %15 {offsets = [0, 224], sizes = [2, 16], strides = [1, 1]} : vector<2x256xf32> to vector<2x16xf32>
    %c1_87 = arith.constant 1 : index
    %c0_88 = arith.constant 0 : index
    %c266_89 = arith.constant 266 : index
    %139 = vector.load %arg4[%c1_87, %c0_88, %c266_89] : memref<2x2x384xf32, #tpu.memory_space<vmem>>, vector<1x2x16xf32>
    %140 = vector.shape_cast %139 : vector<1x2x16xf32> to vector<2x16xf32>
    %141 = vector.shape_cast %138 : vector<2x16xf32> to vector<1x2x16xf32>
    tpu.vector_store %arg4[%c1_87, %c0_88, %c266_89], %141 {strides = array<i32>} : memref<2x2x384xf32, #tpu.memory_space<vmem>>, vector<1x2x16xf32>,
    %142 = vector.extract_strided_slice %15 {offsets = [0, 240], sizes = [2, 16], strides = [1, 1]} : vector<2x256xf32> to vector<2x16xf32>
    %c1_90 = arith.constant 1 : index
    %c0_91 = arith.constant 0 : index
    %c285_92 = arith.constant 285 : index
    %143 = vector.load %arg4[%c1_90, %c0_91, %c285_92] : memref<2x2x384xf32, #tpu.memory_space<vmem>>, vector<1x2x16xf32>
    %144 = vector.shape_cast %143 : vector<1x2x16xf32> to vector<2x16xf32>
    %145 = vector.shape_cast %142 : vector<2x16xf32> to vector<1x2x16xf32>
    tpu.vector_store %arg4[%c1_90, %c0_91, %c285_92], %145 {strides = array<i32>} : memref<2x2x384xf32, #tpu.memory_space<vmem>>, vector<1x2x16xf32>,
    %c0_93 = arith.constant 0 : index
    %c0_94 = arith.constant 0 : index
    %c0_95 = arith.constant 0 : index
    %146 = vector.load %arg4[%c0_93, %c0_94, %c0_95] : memref<2x2x384xf32, #tpu.memory_space<vmem>>, vector<1x2x384xf32>
    %147 = vector.shape_cast %146 : vector<1x2x384xf32> to vector<2x384xf32>
    %c57_i32 = arith.constant 57 : i32
    %148 = tpu.dynamic_rotate %147 by %c57_i32 dim 1 : vector<2x384xf32>, i32 -> vector<2x384xf32>
    %c0_96 = arith.constant 0 : index
    %149 = memref.load %arg1[%c0_96] : memref<98xf32, #tpu.memory_space<smem>>
    %150 = vector.broadcast %149 : f32 to vector<2x384xf32>
    %151 = arith.mulf %150, %148 : vector<2x384xf32>
    %c1_97 = arith.constant 1 : index
    %152 = memref.load %arg1[%c1_97] : memref<98xf32, #tpu.memory_space<smem>>
    %153 = vector.broadcast %152 : f32 to vector<2x384xf32>
    %154 = arith.mulf %153, %148 : vector<2x384xf32>
    %c2_98 = arith.constant 2 : index
    %155 = memref.load %arg1[%c2_98] : memref<98xf32, #tpu.memory_space<smem>>
    %156 = vector.broadcast %155 : f32 to vector<2x384xf32>
    %157 = arith.mulf %156, %148 : vector<2x384xf32>
    %c3_99 = arith.constant 3 : index
    %158 = memref.load %arg1[%c3_99] : memref<98xf32, #tpu.memory_space<smem>>
    %159 = vector.broadcast %158 : f32 to vector<2x384xf32>
    %160 = arith.mulf %159, %148 : vector<2x384xf32>
    %c4 = arith.constant 4 : index
    %161 = memref.load %arg1[%c4] : memref<98xf32, #tpu.memory_space<smem>>
    %162 = vector.broadcast %161 : f32 to vector<2x384xf32>
    %163 = arith.mulf %162, %148 : vector<2x384xf32>
    %c5 = arith.constant 5 : index
    %164 = memref.load %arg1[%c5] : memref<98xf32, #tpu.memory_space<smem>>
    %165 = vector.broadcast %164 : f32 to vector<2x384xf32>
    %166 = arith.mulf %165, %148 : vector<2x384xf32>
    %c6 = arith.constant 6 : index
    %167 = memref.load %arg1[%c6] : memref<98xf32, #tpu.memory_space<smem>>
    %168 = vector.broadcast %167 : f32 to vector<2x384xf32>
    %169 = arith.mulf %168, %148 : vector<2x384xf32>
    %c38_i32 = arith.constant 38 : i32
    %170 = tpu.dynamic_rotate %147 by %c38_i32 dim 1 : vector<2x384xf32>, i32 -> vector<2x384xf32>
    %c7 = arith.constant 7 : index
    %171 = memref.load %arg1[%c7] : memref<98xf32, #tpu.memory_space<smem>>
    %172 = vector.broadcast %171 : f32 to vector<2x384xf32>
    %173 = arith.mulf %172, %170 : vector<2x384xf32>
    %174 = arith.addf %151, %173 : vector<2x384xf32>
    %c8 = arith.constant 8 : index
    %175 = memref.load %arg1[%c8] : memref<98xf32, #tpu.memory_space<smem>>
    %176 = vector.broadcast %175 : f32 to vector<2x384xf32>
    %177 = arith.mulf %176, %170 : vector<2x384xf32>
    %178 = arith.addf %154, %177 : vector<2x384xf32>
    %c9 = arith.constant 9 : index
    %179 = memref.load %arg1[%c9] : memref<98xf32, #tpu.memory_space<smem>>
    %180 = vector.broadcast %179 : f32 to vector<2x384xf32>
    %181 = arith.mulf %180, %170 : vector<2x384xf32>
    %182 = arith.addf %157, %181 : vector<2x384xf32>
    %c10 = arith.constant 10 : index
    %183 = memref.load %arg1[%c10] : memref<98xf32, #tpu.memory_space<smem>>
    %184 = vector.broadcast %183 : f32 to vector<2x384xf32>
    %185 = arith.mulf %184, %170 : vector<2x384xf32>
    %186 = arith.addf %160, %185 : vector<2x384xf32>
    %c11 = arith.constant 11 : index
    %187 = memref.load %arg1[%c11] : memref<98xf32, #tpu.memory_space<smem>>
    %188 = vector.broadcast %187 : f32 to vector<2x384xf32>
    %189 = arith.mulf %188, %170 : vector<2x384xf32>
    %190 = arith.addf %163, %189 : vector<2x384xf32>
    %c12 = arith.constant 12 : index
    %191 = memref.load %arg1[%c12] : memref<98xf32, #tpu.memory_space<smem>>
    %192 = vector.broadcast %191 : f32 to vector<2x384xf32>
    %193 = arith.mulf %192, %170 : vector<2x384xf32>
    %194 = arith.addf %166, %193 : vector<2x384xf32>
    %c13 = arith.constant 13 : index
    %195 = memref.load %arg1[%c13] : memref<98xf32, #tpu.memory_space<smem>>
    %196 = vector.broadcast %195 : f32 to vector<2x384xf32>
    %197 = arith.mulf %196, %170 : vector<2x384xf32>
    %198 = arith.addf %169, %197 : vector<2x384xf32>
    %c19_i32 = arith.constant 19 : i32
    %199 = tpu.dynamic_rotate %147 by %c19_i32 dim 1 : vector<2x384xf32>, i32 -> vector<2x384xf32>
    %c14 = arith.constant 14 : index
    %200 = memref.load %arg1[%c14] : memref<98xf32, #tpu.memory_space<smem>>
    %201 = vector.broadcast %200 : f32 to vector<2x384xf32>
    %202 = arith.mulf %201, %199 : vector<2x384xf32>
    %203 = arith.addf %174, %202 : vector<2x384xf32>
    %c15 = arith.constant 15 : index
    %204 = memref.load %arg1[%c15] : memref<98xf32, #tpu.memory_space<smem>>
    %205 = vector.broadcast %204 : f32 to vector<2x384xf32>
    %206 = arith.mulf %205, %199 : vector<2x384xf32>
    %207 = arith.addf %178, %206 : vector<2x384xf32>
    %c16 = arith.constant 16 : index
    %208 = memref.load %arg1[%c16] : memref<98xf32, #tpu.memory_space<smem>>
    %209 = vector.broadcast %208 : f32 to vector<2x384xf32>
    %210 = arith.mulf %209, %199 : vector<2x384xf32>
    %211 = arith.addf %182, %210 : vector<2x384xf32>
    %c17 = arith.constant 17 : index
    %212 = memref.load %arg1[%c17] : memref<98xf32, #tpu.memory_space<smem>>
    %213 = vector.broadcast %212 : f32 to vector<2x384xf32>
    %214 = arith.mulf %213, %199 : vector<2x384xf32>
    %215 = arith.addf %186, %214 : vector<2x384xf32>
    %c18 = arith.constant 18 : index
    %216 = memref.load %arg1[%c18] : memref<98xf32, #tpu.memory_space<smem>>
    %217 = vector.broadcast %216 : f32 to vector<2x384xf32>
    %218 = arith.mulf %217, %199 : vector<2x384xf32>
    %219 = arith.addf %190, %218 : vector<2x384xf32>
    %c19_100 = arith.constant 19 : index
    %220 = memref.load %arg1[%c19_100] : memref<98xf32, #tpu.memory_space<smem>>
    %221 = vector.broadcast %220 : f32 to vector<2x384xf32>
    %222 = arith.mulf %221, %199 : vector<2x384xf32>
    %223 = arith.addf %194, %222 : vector<2x384xf32>
    %c20 = arith.constant 20 : index
    %224 = memref.load %arg1[%c20] : memref<98xf32, #tpu.memory_space<smem>>
    %225 = vector.broadcast %224 : f32 to vector<2x384xf32>
    %226 = arith.mulf %225, %199 : vector<2x384xf32>
    %227 = arith.addf %198, %226 : vector<2x384xf32>
    %c21 = arith.constant 21 : index
    %228 = memref.load %arg1[%c21] : memref<98xf32, #tpu.memory_space<smem>>
    %229 = vector.broadcast %228 : f32 to vector<2x384xf32>
    %230 = arith.mulf %229, %147 : vector<2x384xf32>
    %231 = arith.addf %203, %230 : vector<2x384xf32>
    %c22 = arith.constant 22 : index
    %232 = memref.load %arg1[%c22] : memref<98xf32, #tpu.memory_space<smem>>
    %233 = vector.broadcast %232 : f32 to vector<2x384xf32>
    %234 = arith.mulf %233, %147 : vector<2x384xf32>
    %235 = arith.addf %207, %234 : vector<2x384xf32>
    %c23 = arith.constant 23 : index
    %236 = memref.load %arg1[%c23] : memref<98xf32, #tpu.memory_space<smem>>
    %237 = vector.broadcast %236 : f32 to vector<2x384xf32>
    %238 = arith.mulf %237, %147 : vector<2x384xf32>
    %239 = arith.addf %211, %238 : vector<2x384xf32>
    %c24 = arith.constant 24 : index
    %240 = memref.load %arg1[%c24] : memref<98xf32, #tpu.memory_space<smem>>
    %241 = vector.broadcast %240 : f32 to vector<2x384xf32>
    %242 = arith.mulf %241, %147 : vector<2x384xf32>
    %243 = arith.addf %215, %242 : vector<2x384xf32>
    %c25 = arith.constant 25 : index
    %244 = memref.load %arg1[%c25] : memref<98xf32, #tpu.memory_space<smem>>
    %245 = vector.broadcast %244 : f32 to vector<2x384xf32>
    %246 = arith.mulf %245, %147 : vector<2x384xf32>
    %247 = arith.addf %219, %246 : vector<2x384xf32>
    %c26 = arith.constant 26 : index
    %248 = memref.load %arg1[%c26] : memref<98xf32, #tpu.memory_space<smem>>
    %249 = vector.broadcast %248 : f32 to vector<2x384xf32>
    %250 = arith.mulf %249, %147 : vector<2x384xf32>
    %251 = arith.addf %223, %250 : vector<2x384xf32>
    %c27 = arith.constant 27 : index
    %252 = memref.load %arg1[%c27] : memref<98xf32, #tpu.memory_space<smem>>
    %253 = vector.broadcast %252 : f32 to vector<2x384xf32>
    %254 = arith.mulf %253, %147 : vector<2x384xf32>
    %255 = arith.addf %227, %254 : vector<2x384xf32>
    %c365_i32 = arith.constant 365 : i32
    %256 = tpu.dynamic_rotate %147 by %c365_i32 dim 1 : vector<2x384xf32>, i32 -> vector<2x384xf32>
    %c28 = arith.constant 28 : index
    %257 = memref.load %arg1[%c28] : memref<98xf32, #tpu.memory_space<smem>>
    %258 = vector.broadcast %257 : f32 to vector<2x384xf32>
    %259 = arith.mulf %258, %256 : vector<2x384xf32>
    %260 = arith.addf %231, %259 : vector<2x384xf32>
    %c29 = arith.constant 29 : index
    %261 = memref.load %arg1[%c29] : memref<98xf32, #tpu.memory_space<smem>>
    %262 = vector.broadcast %261 : f32 to vector<2x384xf32>
    %263 = arith.mulf %262, %256 : vector<2x384xf32>
    %264 = arith.addf %235, %263 : vector<2x384xf32>
    %c30 = arith.constant 30 : index
    %265 = memref.load %arg1[%c30] : memref<98xf32, #tpu.memory_space<smem>>
    %266 = vector.broadcast %265 : f32 to vector<2x384xf32>
    %267 = arith.mulf %266, %256 : vector<2x384xf32>
    %268 = arith.addf %239, %267 : vector<2x384xf32>
    %c31 = arith.constant 31 : index
    %269 = memref.load %arg1[%c31] : memref<98xf32, #tpu.memory_space<smem>>
    %270 = vector.broadcast %269 : f32 to vector<2x384xf32>
    %271 = arith.mulf %270, %256 : vector<2x384xf32>
    %272 = arith.addf %243, %271 : vector<2x384xf32>
    %c32 = arith.constant 32 : index
    %273 = memref.load %arg1[%c32] : memref<98xf32, #tpu.memory_space<smem>>
    %274 = vector.broadcast %273 : f32 to vector<2x384xf32>
    %275 = arith.mulf %274, %256 : vector<2x384xf32>
    %276 = arith.addf %247, %275 : vector<2x384xf32>
    %c33 = arith.constant 33 : index
    %277 = memref.load %arg1[%c33] : memref<98xf32, #tpu.memory_space<smem>>
    %278 = vector.broadcast %277 : f32 to vector<2x384xf32>
    %279 = arith.mulf %278, %256 : vector<2x384xf32>
    %280 = arith.addf %251, %279 : vector<2x384xf32>
    %c34 = arith.constant 34 : index
    %281 = memref.load %arg1[%c34] : memref<98xf32, #tpu.memory_space<smem>>
    %282 = vector.broadcast %281 : f32 to vector<2x384xf32>
    %283 = arith.mulf %282, %256 : vector<2x384xf32>
    %284 = arith.addf %255, %283 : vector<2x384xf32>
    %c346_i32 = arith.constant 346 : i32
    %285 = tpu.dynamic_rotate %147 by %c346_i32 dim 1 : vector<2x384xf32>, i32 -> vector<2x384xf32>
    %c35 = arith.constant 35 : index
    %286 = memref.load %arg1[%c35] : memref<98xf32, #tpu.memory_space<smem>>
    %287 = vector.broadcast %286 : f32 to vector<2x384xf32>
    %288 = arith.mulf %287, %285 : vector<2x384xf32>
    %289 = arith.addf %260, %288 : vector<2x384xf32>
    %c36 = arith.constant 36 : index
    %290 = memref.load %arg1[%c36] : memref<98xf32, #tpu.memory_space<smem>>
    %291 = vector.broadcast %290 : f32 to vector<2x384xf32>
    %292 = arith.mulf %291, %285 : vector<2x384xf32>
    %293 = arith.addf %264, %292 : vector<2x384xf32>
    %c37 = arith.constant 37 : index
    %294 = memref.load %arg1[%c37] : memref<98xf32, #tpu.memory_space<smem>>
    %295 = vector.broadcast %294 : f32 to vector<2x384xf32>
    %296 = arith.mulf %295, %285 : vector<2x384xf32>
    %297 = arith.addf %268, %296 : vector<2x384xf32>
    %c38_101 = arith.constant 38 : index
    %298 = memref.load %arg1[%c38_101] : memref<98xf32, #tpu.memory_space<smem>>
    %299 = vector.broadcast %298 : f32 to vector<2x384xf32>
    %300 = arith.mulf %299, %285 : vector<2x384xf32>
    %301 = arith.addf %272, %300 : vector<2x384xf32>
    %c39 = arith.constant 39 : index
    %302 = memref.load %arg1[%c39] : memref<98xf32, #tpu.memory_space<smem>>
    %303 = vector.broadcast %302 : f32 to vector<2x384xf32>
    %304 = arith.mulf %303, %285 : vector<2x384xf32>
    %305 = arith.addf %276, %304 : vector<2x384xf32>
    %c40 = arith.constant 40 : index
    %306 = memref.load %arg1[%c40] : memref<98xf32, #tpu.memory_space<smem>>
    %307 = vector.broadcast %306 : f32 to vector<2x384xf32>
    %308 = arith.mulf %307, %285 : vector<2x384xf32>
    %309 = arith.addf %280, %308 : vector<2x384xf32>
    %c41 = arith.constant 41 : index
    %310 = memref.load %arg1[%c41] : memref<98xf32, #tpu.memory_space<smem>>
    %311 = vector.broadcast %310 : f32 to vector<2x384xf32>
    %312 = arith.mulf %311, %285 : vector<2x384xf32>
    %313 = arith.addf %284, %312 : vector<2x384xf32>
    %c327_i32 = arith.constant 327 : i32
    %314 = tpu.dynamic_rotate %147 by %c327_i32 dim 1 : vector<2x384xf32>, i32 -> vector<2x384xf32>
    %c42 = arith.constant 42 : index
    %315 = memref.load %arg1[%c42] : memref<98xf32, #tpu.memory_space<smem>>
    %316 = vector.broadcast %315 : f32 to vector<2x384xf32>
    %317 = arith.mulf %316, %314 : vector<2x384xf32>
    %318 = arith.addf %289, %317 : vector<2x384xf32>
    %c43 = arith.constant 43 : index
    %319 = memref.load %arg1[%c43] : memref<98xf32, #tpu.memory_space<smem>>
    %320 = vector.broadcast %319 : f32 to vector<2x384xf32>
    %321 = arith.mulf %320, %314 : vector<2x384xf32>
    %322 = arith.addf %293, %321 : vector<2x384xf32>
    %c44 = arith.constant 44 : index
    %323 = memref.load %arg1[%c44] : memref<98xf32, #tpu.memory_space<smem>>
    %324 = vector.broadcast %323 : f32 to vector<2x384xf32>
    %325 = arith.mulf %324, %314 : vector<2x384xf32>
    %326 = arith.addf %297, %325 : vector<2x384xf32>
    %c45 = arith.constant 45 : index
    %327 = memref.load %arg1[%c45] : memref<98xf32, #tpu.memory_space<smem>>
    %328 = vector.broadcast %327 : f32 to vector<2x384xf32>
    %329 = arith.mulf %328, %314 : vector<2x384xf32>
    %330 = arith.addf %301, %329 : vector<2x384xf32>
    %c46 = arith.constant 46 : index
    %331 = memref.load %arg1[%c46] : memref<98xf32, #tpu.memory_space<smem>>
    %332 = vector.broadcast %331 : f32 to vector<2x384xf32>
    %333 = arith.mulf %332, %314 : vector<2x384xf32>
    %334 = arith.addf %305, %333 : vector<2x384xf32>
    %c47 = arith.constant 47 : index
    %335 = memref.load %arg1[%c47] : memref<98xf32, #tpu.memory_space<smem>>
    %336 = vector.broadcast %335 : f32 to vector<2x384xf32>
    %337 = arith.mulf %336, %314 : vector<2x384xf32>
    %338 = arith.addf %309, %337 : vector<2x384xf32>
    %c48 = arith.constant 48 : index
    %339 = memref.load %arg1[%c48] : memref<98xf32, #tpu.memory_space<smem>>
    %340 = vector.broadcast %339 : f32 to vector<2x384xf32>
    %341 = arith.mulf %340, %314 : vector<2x384xf32>
    %342 = arith.addf %313, %341 : vector<2x384xf32>
    %c1_102 = arith.constant 1 : index
    %c0_103 = arith.constant 0 : index
    %c0_104 = arith.constant 0 : index
    %343 = vector.load %arg4[%c1_102, %c0_103, %c0_104] : memref<2x2x384xf32, #tpu.memory_space<vmem>>, vector<1x2x384xf32>
    %344 = vector.shape_cast %343 : vector<1x2x384xf32> to vector<2x384xf32>
    %c57_i32_105 = arith.constant 57 : i32
    %345 = tpu.dynamic_rotate %344 by %c57_i32_105 dim 1 : vector<2x384xf32>, i32 -> vector<2x384xf32>
    %c49 = arith.constant 49 : index
    %346 = memref.load %arg1[%c49] : memref<98xf32, #tpu.memory_space<smem>>
    %347 = vector.broadcast %346 : f32 to vector<2x384xf32>
    %348 = arith.mulf %347, %345 : vector<2x384xf32>
    %349 = arith.addf %318, %348 : vector<2x384xf32>
    %c50 = arith.constant 50 : index
    %350 = memref.load %arg1[%c50] : memref<98xf32, #tpu.memory_space<smem>>
    %351 = vector.broadcast %350 : f32 to vector<2x384xf32>
    %352 = arith.mulf %351, %345 : vector<2x384xf32>
    %353 = arith.addf %322, %352 : vector<2x384xf32>
    %c51 = arith.constant 51 : index
    %354 = memref.load %arg1[%c51] : memref<98xf32, #tpu.memory_space<smem>>
    %355 = vector.broadcast %354 : f32 to vector<2x384xf32>
    %356 = arith.mulf %355, %345 : vector<2x384xf32>
    %357 = arith.addf %326, %356 : vector<2x384xf32>
    %c52 = arith.constant 52 : index
    %358 = memref.load %arg1[%c52] : memref<98xf32, #tpu.memory_space<smem>>
    %359 = vector.broadcast %358 : f32 to vector<2x384xf32>
    %360 = arith.mulf %359, %345 : vector<2x384xf32>
    %361 = arith.addf %330, %360 : vector<2x384xf32>
    %c53 = arith.constant 53 : index
    %362 = memref.load %arg1[%c53] : memref<98xf32, #tpu.memory_space<smem>>
    %363 = vector.broadcast %362 : f32 to vector<2x384xf32>
    %364 = arith.mulf %363, %345 : vector<2x384xf32>
    %365 = arith.addf %334, %364 : vector<2x384xf32>
    %c54 = arith.constant 54 : index
    %366 = memref.load %arg1[%c54] : memref<98xf32, #tpu.memory_space<smem>>
    %367 = vector.broadcast %366 : f32 to vector<2x384xf32>
    %368 = arith.mulf %367, %345 : vector<2x384xf32>
    %369 = arith.addf %338, %368 : vector<2x384xf32>
    %c55 = arith.constant 55 : index
    %370 = memref.load %arg1[%c55] : memref<98xf32, #tpu.memory_space<smem>>
    %371 = vector.broadcast %370 : f32 to vector<2x384xf32>
    %372 = arith.mulf %371, %345 : vector<2x384xf32>
    %373 = arith.addf %342, %372 : vector<2x384xf32>
    %c38_i32_106 = arith.constant 38 : i32
    %374 = tpu.dynamic_rotate %344 by %c38_i32_106 dim 1 : vector<2x384xf32>, i32 -> vector<2x384xf32>
    %c56 = arith.constant 56 : index
    %375 = memref.load %arg1[%c56] : memref<98xf32, #tpu.memory_space<smem>>
    %376 = vector.broadcast %375 : f32 to vector<2x384xf32>
    %377 = arith.mulf %376, %374 : vector<2x384xf32>
    %378 = arith.addf %349, %377 : vector<2x384xf32>
    %c57_107 = arith.constant 57 : index
    %379 = memref.load %arg1[%c57_107] : memref<98xf32, #tpu.memory_space<smem>>
    %380 = vector.broadcast %379 : f32 to vector<2x384xf32>
    %381 = arith.mulf %380, %374 : vector<2x384xf32>
    %382 = arith.addf %353, %381 : vector<2x384xf32>
    %c58 = arith.constant 58 : index
    %383 = memref.load %arg1[%c58] : memref<98xf32, #tpu.memory_space<smem>>
    %384 = vector.broadcast %383 : f32 to vector<2x384xf32>
    %385 = arith.mulf %384, %374 : vector<2x384xf32>
    %386 = arith.addf %357, %385 : vector<2x384xf32>
    %c59 = arith.constant 59 : index
    %387 = memref.load %arg1[%c59] : memref<98xf32, #tpu.memory_space<smem>>
    %388 = vector.broadcast %387 : f32 to vector<2x384xf32>
    %389 = arith.mulf %388, %374 : vector<2x384xf32>
    %390 = arith.addf %361, %389 : vector<2x384xf32>
    %c60 = arith.constant 60 : index
    %391 = memref.load %arg1[%c60] : memref<98xf32, #tpu.memory_space<smem>>
    %392 = vector.broadcast %391 : f32 to vector<2x384xf32>
    %393 = arith.mulf %392, %374 : vector<2x384xf32>
    %394 = arith.addf %365, %393 : vector<2x384xf32>
    %c61 = arith.constant 61 : index
    %395 = memref.load %arg1[%c61] : memref<98xf32, #tpu.memory_space<smem>>
    %396 = vector.broadcast %395 : f32 to vector<2x384xf32>
    %397 = arith.mulf %396, %374 : vector<2x384xf32>
    %398 = arith.addf %369, %397 : vector<2x384xf32>
    %c62 = arith.constant 62 : index
    %399 = memref.load %arg1[%c62] : memref<98xf32, #tpu.memory_space<smem>>
    %400 = vector.broadcast %399 : f32 to vector<2x384xf32>
    %401 = arith.mulf %400, %374 : vector<2x384xf32>
    %402 = arith.addf %373, %401 : vector<2x384xf32>
    %c19_i32_108 = arith.constant 19 : i32
    %403 = tpu.dynamic_rotate %344 by %c19_i32_108 dim 1 : vector<2x384xf32>, i32 -> vector<2x384xf32>
    %c63 = arith.constant 63 : index
    %404 = memref.load %arg1[%c63] : memref<98xf32, #tpu.memory_space<smem>>
    %405 = vector.broadcast %404 : f32 to vector<2x384xf32>
    %406 = arith.mulf %405, %403 : vector<2x384xf32>
    %407 = arith.addf %378, %406 : vector<2x384xf32>
    %c64 = arith.constant 64 : index
    %408 = memref.load %arg1[%c64] : memref<98xf32, #tpu.memory_space<smem>>
    %409 = vector.broadcast %408 : f32 to vector<2x384xf32>
    %410 = arith.mulf %409, %403 : vector<2x384xf32>
    %411 = arith.addf %382, %410 : vector<2x384xf32>
    %c65 = arith.constant 65 : index
    %412 = memref.load %arg1[%c65] : memref<98xf32, #tpu.memory_space<smem>>
    %413 = vector.broadcast %412 : f32 to vector<2x384xf32>
    %414 = arith.mulf %413, %403 : vector<2x384xf32>
    %415 = arith.addf %386, %414 : vector<2x384xf32>
    %c66 = arith.constant 66 : index
    %416 = memref.load %arg1[%c66] : memref<98xf32, #tpu.memory_space<smem>>
    %417 = vector.broadcast %416 : f32 to vector<2x384xf32>
    %418 = arith.mulf %417, %403 : vector<2x384xf32>
    %419 = arith.addf %390, %418 : vector<2x384xf32>
    %c67 = arith.constant 67 : index
    %420 = memref.load %arg1[%c67] : memref<98xf32, #tpu.memory_space<smem>>
    %421 = vector.broadcast %420 : f32 to vector<2x384xf32>
    %422 = arith.mulf %421, %403 : vector<2x384xf32>
    %423 = arith.addf %394, %422 : vector<2x384xf32>
    %c68 = arith.constant 68 : index
    %424 = memref.load %arg1[%c68] : memref<98xf32, #tpu.memory_space<smem>>
    %425 = vector.broadcast %424 : f32 to vector<2x384xf32>
    %426 = arith.mulf %425, %403 : vector<2x384xf32>
    %427 = arith.addf %398, %426 : vector<2x384xf32>
    %c69 = arith.constant 69 : index
    %428 = memref.load %arg1[%c69] : memref<98xf32, #tpu.memory_space<smem>>
    %429 = vector.broadcast %428 : f32 to vector<2x384xf32>
    %430 = arith.mulf %429, %403 : vector<2x384xf32>
    %431 = arith.addf %402, %430 : vector<2x384xf32>
    %c70 = arith.constant 70 : index
    %432 = memref.load %arg1[%c70] : memref<98xf32, #tpu.memory_space<smem>>
    %433 = vector.broadcast %432 : f32 to vector<2x384xf32>
    %434 = arith.mulf %433, %344 : vector<2x384xf32>
    %435 = arith.addf %407, %434 : vector<2x384xf32>
    %c71 = arith.constant 71 : index
    %436 = memref.load %arg1[%c71] : memref<98xf32, #tpu.memory_space<smem>>
    %437 = vector.broadcast %436 : f32 to vector<2x384xf32>
    %438 = arith.mulf %437, %344 : vector<2x384xf32>
    %439 = arith.addf %411, %438 : vector<2x384xf32>
    %c72 = arith.constant 72 : index
    %440 = memref.load %arg1[%c72] : memref<98xf32, #tpu.memory_space<smem>>
    %441 = vector.broadcast %440 : f32 to vector<2x384xf32>
    %442 = arith.mulf %441, %344 : vector<2x384xf32>
    %443 = arith.addf %415, %442 : vector<2x384xf32>
    %c73 = arith.constant 73 : index
    %444 = memref.load %arg1[%c73] : memref<98xf32, #tpu.memory_space<smem>>
    %445 = vector.broadcast %444 : f32 to vector<2x384xf32>
    %446 = arith.mulf %445, %344 : vector<2x384xf32>
    %447 = arith.addf %419, %446 : vector<2x384xf32>
    %c74 = arith.constant 74 : index
    %448 = memref.load %arg1[%c74] : memref<98xf32, #tpu.memory_space<smem>>
    %449 = vector.broadcast %448 : f32 to vector<2x384xf32>
    %450 = arith.mulf %449, %344 : vector<2x384xf32>
    %451 = arith.addf %423, %450 : vector<2x384xf32>
    %c75 = arith.constant 75 : index
    %452 = memref.load %arg1[%c75] : memref<98xf32, #tpu.memory_space<smem>>
    %453 = vector.broadcast %452 : f32 to vector<2x384xf32>
    %454 = arith.mulf %453, %344 : vector<2x384xf32>
    %455 = arith.addf %427, %454 : vector<2x384xf32>
    %c76_109 = arith.constant 76 : index
    %456 = memref.load %arg1[%c76_109] : memref<98xf32, #tpu.memory_space<smem>>
    %457 = vector.broadcast %456 : f32 to vector<2x384xf32>
    %458 = arith.mulf %457, %344 : vector<2x384xf32>
    %459 = arith.addf %431, %458 : vector<2x384xf32>
    %c365_i32_110 = arith.constant 365 : i32
    %460 = tpu.dynamic_rotate %344 by %c365_i32_110 dim 1 : vector<2x384xf32>, i32 -> vector<2x384xf32>
    %c77 = arith.constant 77 : index
    %461 = memref.load %arg1[%c77] : memref<98xf32, #tpu.memory_space<smem>>
    %462 = vector.broadcast %461 : f32 to vector<2x384xf32>
    %463 = arith.mulf %462, %460 : vector<2x384xf32>
    %464 = arith.addf %435, %463 : vector<2x384xf32>
    %c78 = arith.constant 78 : index
    %465 = memref.load %arg1[%c78] : memref<98xf32, #tpu.memory_space<smem>>
    %466 = vector.broadcast %465 : f32 to vector<2x384xf32>
    %467 = arith.mulf %466, %460 : vector<2x384xf32>
    %468 = arith.addf %439, %467 : vector<2x384xf32>
    %c79 = arith.constant 79 : index
    %469 = memref.load %arg1[%c79] : memref<98xf32, #tpu.memory_space<smem>>
    %470 = vector.broadcast %469 : f32 to vector<2x384xf32>
    %471 = arith.mulf %470, %460 : vector<2x384xf32>
    %472 = arith.addf %443, %471 : vector<2x384xf32>
    %c80 = arith.constant 80 : index
    %473 = memref.load %arg1[%c80] : memref<98xf32, #tpu.memory_space<smem>>
    %474 = vector.broadcast %473 : f32 to vector<2x384xf32>
    %475 = arith.mulf %474, %460 : vector<2x384xf32>
    %476 = arith.addf %447, %475 : vector<2x384xf32>
    %c81 = arith.constant 81 : index
    %477 = memref.load %arg1[%c81] : memref<98xf32, #tpu.memory_space<smem>>
    %478 = vector.broadcast %477 : f32 to vector<2x384xf32>
    %479 = arith.mulf %478, %460 : vector<2x384xf32>
    %480 = arith.addf %451, %479 : vector<2x384xf32>
    %c82 = arith.constant 82 : index
    %481 = memref.load %arg1[%c82] : memref<98xf32, #tpu.memory_space<smem>>
    %482 = vector.broadcast %481 : f32 to vector<2x384xf32>
    %483 = arith.mulf %482, %460 : vector<2x384xf32>
    %484 = arith.addf %455, %483 : vector<2x384xf32>
    %c83 = arith.constant 83 : index
    %485 = memref.load %arg1[%c83] : memref<98xf32, #tpu.memory_space<smem>>
    %486 = vector.broadcast %485 : f32 to vector<2x384xf32>
    %487 = arith.mulf %486, %460 : vector<2x384xf32>
    %488 = arith.addf %459, %487 : vector<2x384xf32>
    %c346_i32_111 = arith.constant 346 : i32
    %489 = tpu.dynamic_rotate %344 by %c346_i32_111 dim 1 : vector<2x384xf32>, i32 -> vector<2x384xf32>
    %c84 = arith.constant 84 : index
    %490 = memref.load %arg1[%c84] : memref<98xf32, #tpu.memory_space<smem>>
    %491 = vector.broadcast %490 : f32 to vector<2x384xf32>
    %492 = arith.mulf %491, %489 : vector<2x384xf32>
    %493 = arith.addf %464, %492 : vector<2x384xf32>
    %c85 = arith.constant 85 : index
    %494 = memref.load %arg1[%c85] : memref<98xf32, #tpu.memory_space<smem>>
    %495 = vector.broadcast %494 : f32 to vector<2x384xf32>
    %496 = arith.mulf %495, %489 : vector<2x384xf32>
    %497 = arith.addf %468, %496 : vector<2x384xf32>
    %c86 = arith.constant 86 : index
    %498 = memref.load %arg1[%c86] : memref<98xf32, #tpu.memory_space<smem>>
    %499 = vector.broadcast %498 : f32 to vector<2x384xf32>
    %500 = arith.mulf %499, %489 : vector<2x384xf32>
    %501 = arith.addf %472, %500 : vector<2x384xf32>
    %c87 = arith.constant 87 : index
    %502 = memref.load %arg1[%c87] : memref<98xf32, #tpu.memory_space<smem>>
    %503 = vector.broadcast %502 : f32 to vector<2x384xf32>
    %504 = arith.mulf %503, %489 : vector<2x384xf32>
    %505 = arith.addf %476, %504 : vector<2x384xf32>
    %c88 = arith.constant 88 : index
    %506 = memref.load %arg1[%c88] : memref<98xf32, #tpu.memory_space<smem>>
    %507 = vector.broadcast %506 : f32 to vector<2x384xf32>
    %508 = arith.mulf %507, %489 : vector<2x384xf32>
    %509 = arith.addf %480, %508 : vector<2x384xf32>
    %c89 = arith.constant 89 : index
    %510 = memref.load %arg1[%c89] : memref<98xf32, #tpu.memory_space<smem>>
    %511 = vector.broadcast %510 : f32 to vector<2x384xf32>
    %512 = arith.mulf %511, %489 : vector<2x384xf32>
    %513 = arith.addf %484, %512 : vector<2x384xf32>
    %c90 = arith.constant 90 : index
    %514 = memref.load %arg1[%c90] : memref<98xf32, #tpu.memory_space<smem>>
    %515 = vector.broadcast %514 : f32 to vector<2x384xf32>
    %516 = arith.mulf %515, %489 : vector<2x384xf32>
    %517 = arith.addf %488, %516 : vector<2x384xf32>
    %c327_i32_112 = arith.constant 327 : i32
    %518 = tpu.dynamic_rotate %344 by %c327_i32_112 dim 1 : vector<2x384xf32>, i32 -> vector<2x384xf32>
    %c91 = arith.constant 91 : index
    %519 = memref.load %arg1[%c91] : memref<98xf32, #tpu.memory_space<smem>>
    %520 = vector.broadcast %519 : f32 to vector<2x384xf32>
    %521 = arith.mulf %520, %518 : vector<2x384xf32>
    %522 = arith.addf %493, %521 : vector<2x384xf32>
    %c92 = arith.constant 92 : index
    %523 = memref.load %arg1[%c92] : memref<98xf32, #tpu.memory_space<smem>>
    %524 = vector.broadcast %523 : f32 to vector<2x384xf32>
    %525 = arith.mulf %524, %518 : vector<2x384xf32>
    %526 = arith.addf %497, %525 : vector<2x384xf32>
    %c93 = arith.constant 93 : index
    %527 = memref.load %arg1[%c93] : memref<98xf32, #tpu.memory_space<smem>>
    %528 = vector.broadcast %527 : f32 to vector<2x384xf32>
    %529 = arith.mulf %528, %518 : vector<2x384xf32>
    %530 = arith.addf %501, %529 : vector<2x384xf32>
    %c94 = arith.constant 94 : index
    %531 = memref.load %arg1[%c94] : memref<98xf32, #tpu.memory_space<smem>>
    %532 = vector.broadcast %531 : f32 to vector<2x384xf32>
    %533 = arith.mulf %532, %518 : vector<2x384xf32>
    %534 = arith.addf %505, %533 : vector<2x384xf32>
    %c95_113 = arith.constant 95 : index
    %535 = memref.load %arg1[%c95_113] : memref<98xf32, #tpu.memory_space<smem>>
    %536 = vector.broadcast %535 : f32 to vector<2x384xf32>
    %537 = arith.mulf %536, %518 : vector<2x384xf32>
    %538 = arith.addf %509, %537 : vector<2x384xf32>
    %c96 = arith.constant 96 : index
    %539 = memref.load %arg1[%c96] : memref<98xf32, #tpu.memory_space<smem>>
    %540 = vector.broadcast %539 : f32 to vector<2x384xf32>
    %541 = arith.mulf %540, %518 : vector<2x384xf32>
    %542 = arith.addf %513, %541 : vector<2x384xf32>
    %c97 = arith.constant 97 : index
    %543 = memref.load %arg1[%c97] : memref<98xf32, #tpu.memory_space<smem>>
    %544 = vector.broadcast %543 : f32 to vector<2x384xf32>
    %545 = arith.mulf %544, %518 : vector<2x384xf32>
    %546 = arith.addf %517, %545 : vector<2x384xf32>
    %c3_i32 = arith.constant 3 : i32
    %547 = tpu.dynamic_rotate %522 by %c3_i32 dim 1 : vector<2x384xf32>, i32 -> vector<2x384xf32>
    %c2_i32 = arith.constant 2 : i32
    %548 = tpu.dynamic_rotate %526 by %c2_i32 dim 1 : vector<2x384xf32>, i32 -> vector<2x384xf32>
    %549 = arith.addf %547, %548 : vector<2x384xf32>
    %c1_i32 = arith.constant 1 : i32
    %550 = tpu.dynamic_rotate %530 by %c1_i32 dim 1 : vector<2x384xf32>, i32 -> vector<2x384xf32>
    %551 = arith.addf %549, %550 : vector<2x384xf32>
    %552 = arith.addf %551, %534 : vector<2x384xf32>
    %c383_i32 = arith.constant 383 : i32
    %553 = tpu.dynamic_rotate %538 by %c383_i32 dim 1 : vector<2x384xf32>, i32 -> vector<2x384xf32>
    %554 = arith.addf %552, %553 : vector<2x384xf32>
    %c382_i32 = arith.constant 382 : i32
    %555 = tpu.dynamic_rotate %542 by %c382_i32 dim 1 : vector<2x384xf32>, i32 -> vector<2x384xf32>
    %556 = arith.addf %554, %555 : vector<2x384xf32>
    %c381_i32 = arith.constant 381 : i32
    %557 = tpu.dynamic_rotate %546 by %c381_i32 dim 1 : vector<2x384xf32>, i32 -> vector<2x384xf32>
    %558 = arith.addf %556, %557 : vector<2x384xf32>
    %559 = vector.extract_strided_slice %558 {offsets = [0, 0], sizes = [2, 16], strides = [1, 1]} : vector<2x384xf32> to vector<2x16xf32>
    %560 = vector.extract_strided_slice %558 {offsets = [0, 19], sizes = [2, 16], strides = [1, 1]} : vector<2x384xf32> to vector<2x16xf32>
    %561 = vector.extract_strided_slice %558 {offsets = [0, 38], sizes = [2, 16], strides = [1, 1]} : vector<2x384xf32> to vector<2x16xf32>
    %562 = vector.extract_strided_slice %558 {offsets = [0, 57], sizes = [2, 16], strides = [1, 1]} : vector<2x384xf32> to vector<2x16xf32>
    %563 = vector.extract_strided_slice %558 {offsets = [0, 76], sizes = [2, 16], strides = [1, 1]} : vector<2x384xf32> to vector<2x16xf32>
    %564 = vector.extract_strided_slice %558 {offsets = [0, 95], sizes = [2, 16], strides = [1, 1]} : vector<2x384xf32> to vector<2x16xf32>
    %565 = vector.extract_strided_slice %558 {offsets = [0, 114], sizes = [2, 16], strides = [1, 1]} : vector<2x384xf32> to vector<2x16xf32>
    %566 = vector.extract_strided_slice %558 {offsets = [0, 133], sizes = [2, 16], strides = [1, 1]} : vector<2x384xf32> to vector<2x16xf32>
    %567 = vector.extract_strided_slice %558 {offsets = [0, 152], sizes = [2, 16], strides = [1, 1]} : vector<2x384xf32> to vector<2x16xf32>
    %568 = vector.extract_strided_slice %558 {offsets = [0, 171], sizes = [2, 16], strides = [1, 1]} : vector<2x384xf32> to vector<2x16xf32>
    %569 = vector.extract_strided_slice %558 {offsets = [0, 190], sizes = [2, 16], strides = [1, 1]} : vector<2x384xf32> to vector<2x16xf32>
    %570 = vector.extract_strided_slice %558 {offsets = [0, 209], sizes = [2, 16], strides = [1, 1]} : vector<2x384xf32> to vector<2x16xf32>
    %571 = vector.extract_strided_slice %558 {offsets = [0, 228], sizes = [2, 16], strides = [1, 1]} : vector<2x384xf32> to vector<2x16xf32>
    %572 = vector.extract_strided_slice %558 {offsets = [0, 247], sizes = [2, 16], strides = [1, 1]} : vector<2x384xf32> to vector<2x16xf32>
    %573 = vector.extract_strided_slice %558 {offsets = [0, 266], sizes = [2, 16], strides = [1, 1]} : vector<2x384xf32> to vector<2x16xf32>
    %574 = vector.extract_strided_slice %558 {offsets = [0, 285], sizes = [2, 16], strides = [1, 1]} : vector<2x384xf32> to vector<2x16xf32>
    %575 = tpu.concatenate %559, %560, %561, %562, %563, %564, %565, %566, %567, %568, %569, %570, %571, %572, %573, %574 in 1 : vector<2x16xf32>, vector<2x16xf32>, vector<2x16xf32>, vector<2x16xf32>, vector<2x16xf32>, vector<2x16xf32>, vector<2x16xf32>, vector<2x16xf32>, vector<2x16xf32>, vector<2x16xf32>, vector<2x16xf32>, vector<2x16xf32>, vector<2x16xf32>, vector<2x16xf32>, vector<2x16xf32>, vector<2x16xf32> -> vector<2x256xf32>
    %576 = arith.negf %575 : vector<2x256xf32>
    %577 = math.exp %576 : vector<2x256xf32>
    %cst_114 = arith.constant 1.000000e+00 : f32
    %578 = vector.broadcast %cst_114 : f32 to vector<2x256xf32>
    %579 = arith.addf %578, %577 : vector<2x256xf32>
    %580 = arith.divf %578, %579 : vector<2x256xf32>
    %c0_115 = arith.constant 0 : index
    %c0_116 = arith.constant 0 : index
    %c0_117 = arith.constant 0 : index
    %581 = vector.load %arg2[%c0_115, %c0_116, %c0_117] : memref<2x4x256xf32, #tpu.memory_space<vmem>>, vector<2x1x256xf32>
    %582 = vector.shape_cast %581 : vector<2x1x256xf32> to vector<2x256xf32>
    %583 = arith.mulf %580, %582 : vector<2x256xf32>
    %c0_118 = arith.constant 0 : index
    %c0_119 = arith.constant 0 : index
    %c0_120 = arith.constant 0 : index
    %584 = vector.load %arg3[%c0_118, %c0_119, %c0_120] : memref<2x4x256xf32, #tpu.memory_space<vmem>>, vector<2x1x256xf32>
    %585 = vector.shape_cast %584 : vector<2x1x256xf32> to vector<2x256xf32>
    %586 = vector.shape_cast %583 : vector<2x256xf32> to vector<2x1x256xf32>
    tpu.vector_store %arg3[%c0_118, %c0_119, %c0_120], %586 {strides = array<i32>} : memref<2x4x256xf32, #tpu.memory_space<vmem>>, vector<2x1x256xf32>,
    %c0_121 = arith.constant 0 : index
    %c1_122 = arith.constant 1 : index
    %c0_123 = arith.constant 0 : index
    %587 = vector.load %arg2[%c0_121, %c1_122, %c0_123] : memref<2x4x256xf32, #tpu.memory_space<vmem>>, vector<2x1x256xf32>
    %588 = vector.shape_cast %587 : vector<2x1x256xf32> to vector<2x256xf32>
    %589 = arith.mulf %580, %588 : vector<2x256xf32>
    %c0_124 = arith.constant 0 : index
    %c1_125 = arith.constant 1 : index
    %c0_126 = arith.constant 0 : index
    %590 = vector.load %arg3[%c0_124, %c1_125, %c0_126] : memref<2x4x256xf32, #tpu.memory_space<vmem>>, vector<2x1x256xf32>
    %591 = vector.shape_cast %590 : vector<2x1x256xf32> to vector<2x256xf32>
    %592 = vector.shape_cast %589 : vector<2x256xf32> to vector<2x1x256xf32>
    tpu.vector_store %arg3[%c0_124, %c1_125, %c0_126], %592 {strides = array<i32>} : memref<2x4x256xf32, #tpu.memory_space<vmem>>, vector<2x1x256xf32>,
    %c0_127 = arith.constant 0 : index
    %c2_128 = arith.constant 2 : index
    %c0_129 = arith.constant 0 : index
    %593 = vector.load %arg2[%c0_127, %c2_128, %c0_129] : memref<2x4x256xf32, #tpu.memory_space<vmem>>, vector<2x1x256xf32>
    %594 = vector.shape_cast %593 : vector<2x1x256xf32> to vector<2x256xf32>
    %595 = arith.mulf %580, %594 : vector<2x256xf32>
    %c0_130 = arith.constant 0 : index
    %c2_131 = arith.constant 2 : index
    %c0_132 = arith.constant 0 : index
    %596 = vector.load %arg3[%c0_130, %c2_131, %c0_132] : memref<2x4x256xf32, #tpu.memory_space<vmem>>, vector<2x1x256xf32>
    %597 = vector.shape_cast %596 : vector<2x1x256xf32> to vector<2x256xf32>
    %598 = vector.shape_cast %595 : vector<2x256xf32> to vector<2x1x256xf32>
    tpu.vector_store %arg3[%c0_130, %c2_131, %c0_132], %598 {strides = array<i32>} : memref<2x4x256xf32, #tpu.memory_space<vmem>>, vector<2x1x256xf32>,
    %c0_133 = arith.constant 0 : index
    %c3_134 = arith.constant 3 : index
    %c0_135 = arith.constant 0 : index
    %599 = vector.load %arg2[%c0_133, %c3_134, %c0_135] : memref<2x4x256xf32, #tpu.memory_space<vmem>>, vector<2x1x256xf32>
    %600 = vector.shape_cast %599 : vector<2x1x256xf32> to vector<2x256xf32>
    %601 = arith.mulf %580, %600 : vector<2x256xf32>
    %c0_136 = arith.constant 0 : index
    %c3_137 = arith.constant 3 : index
    %c0_138 = arith.constant 0 : index
    %602 = vector.load %arg3[%c0_136, %c3_137, %c0_138] : memref<2x4x256xf32, #tpu.memory_space<vmem>>, vector<2x1x256xf32>
    %603 = vector.shape_cast %602 : vector<2x1x256xf32> to vector<2x256xf32>
    %604 = vector.shape_cast %601 : vector<2x256xf32> to vector<2x1x256xf32>
    tpu.vector_store %arg3[%c0_136, %c3_137, %c0_138], %604 {strides = array<i32>} : memref<2x4x256xf32, #tpu.memory_space<vmem>>, vector<2x1x256xf32>,
    return
  }
  func.func @transform_0(%arg0: i32) -> i32 {
    %c0_i32 = arith.constant 0 : i32
    %c0_i32_0 = arith.constant 0 : i32
    return %c0_i32 : i32
  }
  func.func @transform_1(%arg0: i32) -> (i32, i32, i32) {
    %c0_i32 = arith.constant 0 : i32
    %c0_i32_0 = arith.constant 0 : i32
    %c0_i32_1 = arith.constant 0 : i32
    return %arg0, %c0_i32, %c0_i32_0 : i32, i32, i32
  }
  func.func @transform_2(%arg0: i32) -> (i32, i32, i32) {
    %c0_i32 = arith.constant 0 : i32
    %c0_i32_0 = arith.constant 0 : i32
    %c0_i32_1 = arith.constant 0 : i32
    return %arg0, %c0_i32, %c0_i32_0 : i32, i32, i32
  }
}

</mosaic_0001>

<llo_original>
// kernel: tpu_custom_call.1
$region0: #{tpu_custom_call.1}
  #allocation0 [shape = 'u32[]', space=smem, size = 0x4, offset = 0x4, fixed_abs, tag = 'smem constant byte address 0x4 - core index']
  #allocation1 [shape = 'u32[144,128]{1,0:T(1,128)}', space=vmem, size = 0x12000, scoped, tag = 'internal scratch']
  #allocation2 [shape = 'f32[2,2,384]{2,1,0:T(2,128)}', space=vmem, size = 0x1800, scoped, tag = 'scratch operand']
  %s0 = inlined_call_operand.hbm [shape: f32[98], index: 0, kind: input, shape index: {}]
  %s1 = inlined_call_operand.hbm [shape: f32[2,4,256], index: 1, kind: input, shape index: {}]
  %s2 = inlined_call_operand.hbm [shape: f32[2,4,256], index: 2, kind: output, shape index: {}]
  %s3 = sld [smem:[#allocation0]]
  $region26: #{tpu_custom_call.1} parent=0
    _
  %s5 = ssub.s32 1, %s3
  %s6 = scalar_select 0, %s5, %s3
  $region1: #{tpu_custom_call.1} parent=0
    #allocation3 [shape = 'u8[512]{0}', space=smem, size = 0x200, scoped, tag = 'input window, operand 0, single buffered']
    #allocation4 [shape = 's32[1]{0}', space=sflag, size = 0x4, scoped, tag = 'scoped memory for tpu_custom_call.1']
    #allocation5 [shape = 's32[1]{0}', space=sflag, size = 0x4, scoped, tag = 'scoped memory for tpu_custom_call.1']
    #allocation6 [shape = 's32[1]{0}', space=sflag, size = 0x4, scoped, tag = 'scoped memory for tpu_custom_call.1']
    #allocation7 [shape = 'u8[8192]{0}', space=vmem, size = 0x2000, scoped, tag = 'input window, operand 1, single buffered']
    #allocation8 [shape = 'u8[8192]{0}', space=vmem, size = 0x2000, scoped, tag = 'output window, operand 0, single buffered']
    %7 = vsyncpa [#allocation6], 0
    %8 = vsyncpa [#allocation4], 0
    %9 = vsyncpa [#allocation5], 0
    // Predicated region
    $region2: #{tpu_custom_call.1} parent=1 // pred_check
      _
    $region3: #{tpu_custom_call.1} parent=1 // pred_check_branch
      %11 = sbr.rel (0) target = $region5
    $region4: #{tpu_custom_call.1} parent=1 // pred_region
      %s13 = ssub.s32 16, 16
      %14 = vsyncadd [#allocation6], %s13
      %17 = dma.hbm_to_smem %s0, 16, [#allocation3], [#allocation6]
    $region5: #{tpu_custom_call.1} parent=1 // pred_fallthru
      _
    // Predicated region
    $region6: #{tpu_custom_call.1} parent=1 // pred_check
      _
    $region7: #{tpu_custom_call.1} parent=1 // pred_check_branch
      %19 = sbr.rel (0) target = $region9
    $region8: #{tpu_custom_call.1} parent=1 // pred_region
      %s21 = ssub.s32 256, 256
      %22 = vsyncadd [#allocation4], %s21
      %s23 = sshll.u32 [#allocation7], 4
      %s24 = int_to_ptr.vmem [resolvable:$true] %s23
      %29 = dma.hbm_to_vmem [thread:$0]  %s1, 256, %s24, [#allocation4], 128, 128, 8
    $region9: #{tpu_custom_call.1} parent=1 // pred_fallthru
      _
    // Predicated region
    $region10: #{tpu_custom_call.1} parent=1 // pred_check
      _
    $region11: #{tpu_custom_call.1} parent=1 // pred_check_branch
      %31 = sbr.rel (0) target = $region13
    $region12: #{tpu_custom_call.1} parent=1 // pred_region
      %32 = dma.done [#allocation6], 16
    $region13: #{tpu_custom_call.1} parent=1 // pred_fallthru
      _
    // Predicated region
    $region14: #{tpu_custom_call.1} parent=1 // pred_check
      _
    $region15: #{tpu_custom_call.1} parent=1 // pred_check_branch
      %34 = sbr.rel (0) target = $region17
    $region16: #{tpu_custom_call.1} parent=1 // pred_region
      %35 = dma.done [#allocation4], 256
    $region17: #{tpu_custom_call.1} parent=1 // pred_fallthru
      _
    %36 = sfence
    %37 = vst [vmem:[#allocation2] sm:$0x3f] 0.0
    %38 = vst [vmem:[#allocation2 + $0x6] sm:$0x3f] 0.0
    %v39 = vld [vmem:[#allocation7] ss:$4 sm:$0x3]
    %s40 = scalar_lea.vmem [#allocation7], 8
    %v41 = vld [vmem:[%s40] ss:$4 sm:$0x3]
    %s42 = scalar_lea.vmem [#allocation7], 1
    %v43 = vld [vmem:[%s42] ss:$4 sm:$0x3]
    %s44 = scalar_lea.vmem [#allocation7], 9
    %v45 = vld [vmem:[%s44] ss:$4 sm:$0x3]
    %v46 = vadd.f32 %v39, %v43
    %v47 = vadd.f32 %v41, %v45
    %v48 = vmax.f32 %v39, %v43
    %v49 = vmax.f32 %v41, %v45
    %s50 = scalar_lea.vmem [#allocation7], 2
    %v51 = vld [vmem:[%s50] ss:$4 sm:$0x3]
    %s52 = scalar_lea.vmem [#allocation7], 10
    %v53 = vld [vmem:[%s52] ss:$4 sm:$0x3]
    %v54 = vadd.f32 %v46, %v51
    %v55 = vadd.f32 %v47, %v53
    %v56 = vmax.f32 %v48, %v51
    %v57 = vmax.f32 %v49, %v53
    %s58 = scalar_lea.vmem [#allocation7], 3
    %v59 = vld [vmem:[%s58] ss:$4 sm:$0x3]
    %s60 = scalar_lea.vmem [#allocation7], 11
    %v61 = vld [vmem:[%s60] ss:$4 sm:$0x3]
    %v62 = vadd.f32 %v54, %v59
    %v63 = vadd.f32 %v55, %v61
    %v64 = vmax.f32 %v56, %v59
    %v65 = vmax.f32 %v57, %v61
    %v66 = vmul.f32 %v62, 0.25
    %v67 = vmul.f32 %v63, 0.25
    %v70 = vcombine.low %v66, %v67
    %v72 = vunpack.c.l.s4 1935823168
    %v73 = vunpack.c.0.s8 %v72
    %v74 = vlaneseq
    %v75 = vshrl.u32 %v74, 7
    %v76 = vsub.s32 %v73, %v75
    %v77 = vrot.slane %v70, %v76
    %vm79 = vcmask 123904
    %80 = vst.msk [vmem:[#allocation2] sm:$0x3] %vm79, %v77
    %81 = vrot.lane.b32.xlu0 %v77, 3
    %v82 = vpop.permute.xlu0 %81
    %vm84 = vcmask 279704
    %85 = vst.msk [vmem:[#allocation2] sm:$0x3] %vm84, %v82
    %86 = vrot.lane.b32.xlu0 %v77, 6
    %v87 = vpop.permute.xlu0 %86
    %vm89 = vcmask 435504
    %90 = vst.msk [vmem:[#allocation2] sm:$0x3] %vm89, %v87
    %91 = vrot.lane.b32.xlu0 %v77, 9
    %v92 = vpop.permute.xlu0 %91
    %vm94 = vcmask 591304
    %95 = vst.msk [vmem:[#allocation2] sm:$0x3] %vm94, %v92
    %96 = vrot.lane.b32.xlu0 %v77, 12
    %v97 = vpop.permute.xlu0 %96
    %vm99 = vcmask 747104
    %100 = vst.msk [vmem:[#allocation2] sm:$0x3] %vm99, %v97
    %101 = vrot.lane.b32.xlu0 %v77, 15
    %v102 = vpop.permute.xlu0 %101
    %vm104 = vcmask 902904
    %105 = vst.msk [vmem:[#allocation2] sm:$0x3] %vm104, %v102
    %106 = vrot.lane.b32.xlu0 %v77, 18
    %v107 = vpop.permute.xlu0 %106
    %v108 = vrot.slane %v107, 6
    %vm109 = vcmask 146432
    %v110 = vsel %vm109, %v108, %v107
    %vm112 = vcmask 1042320
    %vm113 = vcmask 11266
    %vm114 = vmor %vm113, %vm112
    %115 = vst.msk [vmem:[#allocation2] sm:$0xf] %vm114, %v110
    %116 = vrot.lane.b32.xlu0 %v77, 21
    %v117 = vpop.permute.xlu0 %116
    %vm119 = vcmask 164904
    %120 = vst.msk [vmem:[#allocation2 + $0x2] sm:$0x3] %vm119, %v117
    %v121 = vrot.slane %v66, 1
    %v122 = vrot.slane %v67, 1
    %v123 = vcombine.low %v121, %v122
    %v125 = vunpack.c.l.s4 1935823168
    %v126 = vunpack.c.0.s8 %v125
    %v127 = vlaneseq
    %v128 = vshrl.u32 %v127, 7
    %v129 = vsub.s32 %v126, %v128
    %v130 = vrot.slane %v123, %v129
    %131 = vrot.lane.b32.xlu0 %v130, 24
    %v132 = vpop.permute.xlu0 %131
    %vm134 = vcmask 320704
    %135 = vst.msk [vmem:[#allocation2 + $0x2] sm:$0x3] %vm134, %v132
    %136 = vrot.lane.b32.xlu0 %v66, 112
    %v137 = vpop.permute.xlu0 %136
    %138 = vrot.lane.b32.xlu0 %v67, 112
    %v139 = vpop.permute.xlu0 %138
    %v140 = vrot.slane %v137, 1
    %v141 = vrot.slane %v139, 1
    %v142 = vcombine.low %v140, %v141
    %v144 = vunpack.c.l.s4 1935823168
    %v145 = vunpack.c.0.s8 %v144
    %v146 = vlaneseq
    %v147 = vshrl.u32 %v146, 7
    %v148 = vsub.s32 %v145, %v147
    %v149 = vrot.slane %v142, %v148
    %150 = vrot.lane.b32.xlu0 %v149, 43
    %v151 = vpop.permute.xlu0 %150
    %vm153 = vcmask 476504
    %154 = vst.msk [vmem:[#allocation2 + $0x2] sm:$0x3] %vm153, %v151
    %155 = vrot.lane.b32.xlu0 %v66, 96
    %v156 = vpop.permute.xlu0 %155
    %157 = vrot.lane.b32.xlu0 %v67, 96
    %v158 = vpop.permute.xlu0 %157
    %v159 = vrot.slane %v156, 1
    %v160 = vrot.slane %v158, 1
    %v161 = vcombine.low %v159, %v160
    %v163 = vunpack.c.l.s4 1935823168
    %v164 = vunpack.c.0.s8 %v163
    %v165 = vlaneseq
    %v166 = vshrl.u32 %v165, 7
    %v167 = vsub.s32 %v164, %v166
    %v168 = vrot.slane %v161, %v167
    %169 = vrot.lane.b32.xlu0 %v168, 62
    %v170 = vpop.permute.xlu0 %169
    %vm172 = vcmask 632304
    %173 = vst.msk [vmem:[#allocation2 + $0x2] sm:$0x3] %vm172, %v170
    %174 = vrot.lane.b32.xlu0 %v66, 80
    %v175 = vpop.permute.xlu0 %174
    %176 = vrot.lane.b32.xlu0 %v67, 80
    %v177 = vpop.permute.xlu0 %176
    %v178 = vrot.slane %v175, 1
    %v179 = vrot.slane %v177, 1
    %v180 = vcombine.low %v178, %v179
    %v182 = vunpack.c.l.s4 1935823168
    %v183 = vunpack.c.0.s8 %v182
    %v184 = vlaneseq
    %v185 = vshrl.u32 %v184, 7
    %v186 = vsub.s32 %v183, %v185
    %v187 = vrot.slane %v180, %v186
    %188 = vrot.lane.b32.xlu0 %v187, 81
    %v189 = vpop.permute.xlu0 %188
    %vm191 = vcmask 788104
    %192 = vst.msk [vmem:[#allocation2 + $0x2] sm:$0x3] %vm191, %v189
    %193 = vrot.lane.b32.xlu0 %v66, 64
    %v194 = vpop.permute.xlu0 %193
    %195 = vrot.lane.b32.xlu0 %v67, 64
    %v196 = vpop.permute.xlu0 %195
    %v197 = vrot.slane %v194, 1
    %v198 = vrot.slane %v196, 1
    %v199 = vcombine.low %v197, %v198
    %v201 = vunpack.c.l.s4 1935823168
    %v202 = vunpack.c.0.s8 %v201
    %v203 = vlaneseq
    %v204 = vshrl.u32 %v203, 7
    %v205 = vsub.s32 %v202, %v204
    %v206 = vrot.slane %v199, %v205
    %207 = vrot.lane.b32.xlu0 %v206, 100
    %v208 = vpop.permute.xlu0 %207
    %vm210 = vcmask 943904
    %211 = vst.msk [vmem:[#allocation2 + $0x2] sm:$0x3] %vm210, %v208
    %212 = vrot.lane.b32.xlu0 %v66, 48
    %v213 = vpop.permute.xlu0 %212
    %214 = vrot.lane.b32.xlu0 %v67, 48
    %v215 = vpop.permute.xlu0 %214
    %v216 = vrot.slane %v213, 1
    %v217 = vrot.slane %v215, 1
    %v218 = vcombine.low %v216, %v217
    %v220 = vunpack.c.l.s4 1935823168
    %v221 = vunpack.c.0.s8 %v220
    %v222 = vlaneseq
    %v223 = vshrl.u32 %v222, 7
    %v224 = vsub.s32 %v221, %v223
    %v225 = vrot.slane %v218, %v224
    %226 = vrot.lane.b32.xlu0 %v225, 119
    %v227 = vpop.permute.xlu0 %226
    %v228 = vrot.slane %v227, 6
    %vm229 = vcmask 973824
    %v230 = vsel %vm229, %v228, %v227
    %vm232 = vcmask 1042360
    %vm233 = vcmask 52226
    %vm234 = vmor %vm233, %vm232
    %235 = vst.msk [vmem:[#allocation2 + $0x2] sm:$0xf] %vm234, %v230
    %236 = vrot.lane.b32.xlu0 %v66, 32
    %v237 = vpop.permute.xlu0 %236
    %238 = vrot.lane.b32.xlu0 %v67, 32
    %v239 = vpop.permute.xlu0 %238
    %v240 = vrot.slane %v237, 1
    %v241 = vrot.slane %v239, 1
    %v242 = vcombine.low %v240, %v241
    %v244 = vunpack.c.l.s4 1935823168
    %v245 = vunpack.c.0.s8 %v244
    %v246 = vlaneseq
    %v247 = vshrl.u32 %v246, 7
    %v248 = vsub.s32 %v245, %v247
    %v249 = vrot.slane %v242, %v248
    %250 = vrot.lane.b32.xlu0 %v249, 10
    %v251 = vpop.permute.xlu0 %250
    %vm253 = vcmask 205904
    %254 = vst.msk [vmem:[#allocation2 + $0x4] sm:$0x3] %vm253, %v251
    %255 = vrot.lane.b32.xlu0 %v66, 16
    %v256 = vpop.permute.xlu0 %255
    %257 = vrot.lane.b32.xlu0 %v67, 16
    %v258 = vpop.permute.xlu0 %257
    %v259 = vrot.slane %v256, 1
    %v260 = vrot.slane %v258, 1
    %v261 = vcombine.low %v259, %v260
    %v263 = vunpack.c.l.s4 1935823168
    %v264 = vunpack.c.0.s8 %v263
    %v265 = vlaneseq
    %v266 = vshrl.u32 %v265, 7
    %v267 = vsub.s32 %v264, %v266
    %v268 = vrot.slane %v261, %v267
    %269 = vrot.lane.b32.xlu0 %v268, 29
    %v270 = vpop.permute.xlu0 %269
    %vm272 = vcmask 361704
    %273 = vst.msk [vmem:[#allocation2 + $0x4] sm:$0x3] %vm272, %v270
    %v276 = vcombine.low %v64, %v65
    %v278 = vunpack.c.l.s4 1935823168
    %v279 = vunpack.c.0.s8 %v278
    %v280 = vlaneseq
    %v281 = vshrl.u32 %v280, 7
    %v282 = vsub.s32 %v279, %v281
    %v283 = vrot.slane %v276, %v282
    %s285 = scalar_lea.vmem [#allocation2], 6
    %286 = vst.msk [vmem:[%s285] sm:$0x3] %vm79, %v283
    %287 = vrot.lane.b32.xlu0 %v283, 3
    %v288 = vpop.permute.xlu0 %287
    %290 = vst.msk [vmem:[%s285] sm:$0x3] %vm84, %v288
    %291 = vrot.lane.b32.xlu0 %v283, 6
    %v292 = vpop.permute.xlu0 %291
    %294 = vst.msk [vmem:[%s285] sm:$0x3] %vm89, %v292
    %295 = vrot.lane.b32.xlu0 %v283, 9
    %v296 = vpop.permute.xlu0 %295
    %298 = vst.msk [vmem:[%s285] sm:$0x3] %vm94, %v296
    %299 = vrot.lane.b32.xlu0 %v283, 12
    %v300 = vpop.permute.xlu0 %299
    %302 = vst.msk [vmem:[%s285] sm:$0x3] %vm99, %v300
    %303 = vrot.lane.b32.xlu0 %v283, 15
    %v304 = vpop.permute.xlu0 %303
    %306 = vst.msk [vmem:[%s285] sm:$0x3] %vm104, %v304
    %307 = vrot.lane.b32.xlu0 %v283, 18
    %v308 = vpop.permute.xlu0 %307
    %v309 = vrot.slane %v308, 6
    %v310 = vsel %vm109, %v309, %v308
    %312 = vst.msk [vmem:[%s285] sm:$0xf] %vm114, %v310
    %313 = vrot.lane.b32.xlu0 %v283, 21
    %v314 = vpop.permute.xlu0 %313
    %316 = vst.msk [vmem:[%s285 + $0x2] sm:$0x3] %vm119, %v314
    %v317 = vrot.slane %v64, 1
    %v318 = vrot.slane %v65, 1
    %v319 = vcombine.low %v317, %v318
    %v321 = vunpack.c.l.s4 1935823168
    %v322 = vunpack.c.0.s8 %v321
    %v323 = vlaneseq
    %v324 = vshrl.u32 %v323, 7
    %v325 = vsub.s32 %v322, %v324
    %v326 = vrot.slane %v319, %v325
    %327 = vrot.lane.b32.xlu0 %v326, 24
    %v328 = vpop.permute.xlu0 %327
    %330 = vst.msk [vmem:[%s285 + $0x2] sm:$0x3] %vm134, %v328
    %331 = vrot.lane.b32.xlu0 %v64, 112
    %v332 = vpop.permute.xlu0 %331
    %333 = vrot.lane.b32.xlu0 %v65, 112
    %v334 = vpop.permute.xlu0 %333
    %v335 = vrot.slane %v332, 1
    %v336 = vrot.slane %v334, 1
    %v337 = vcombine.low %v335, %v336
    %v339 = vunpack.c.l.s4 1935823168
    %v340 = vunpack.c.0.s8 %v339
    %v341 = vlaneseq
    %v342 = vshrl.u32 %v341, 7
    %v343 = vsub.s32 %v340, %v342
    %v344 = vrot.slane %v337, %v343
    %345 = vrot.lane.b32.xlu0 %v344, 43
    %v346 = vpop.permute.xlu0 %345
    %348 = vst.msk [vmem:[%s285 + $0x2] sm:$0x3] %vm153, %v346
    %349 = vrot.lane.b32.xlu0 %v64, 96
    %v350 = vpop.permute.xlu0 %349
    %351 = vrot.lane.b32.xlu0 %v65, 96
    %v352 = vpop.permute.xlu0 %351
    %v353 = vrot.slane %v350, 1
    %v354 = vrot.slane %v352, 1
    %v355 = vcombine.low %v353, %v354
    %v357 = vunpack.c.l.s4 1935823168
    %v358 = vunpack.c.0.s8 %v357
    %v359 = vlaneseq
    %v360 = vshrl.u32 %v359, 7
    %v361 = vsub.s32 %v358, %v360
    %v362 = vrot.slane %v355, %v361
    %363 = vrot.lane.b32.xlu0 %v362, 62
    %v364 = vpop.permute.xlu0 %363
    %366 = vst.msk [vmem:[%s285 + $0x2] sm:$0x3] %vm172, %v364
    %367 = vrot.lane.b32.xlu0 %v64, 80
    %v368 = vpop.permute.xlu0 %367
    %369 = vrot.lane.b32.xlu0 %v65, 80
    %v370 = vpop.permute.xlu0 %369
    %v371 = vrot.slane %v368, 1
    %v372 = vrot.slane %v370, 1
    %v373 = vcombine.low %v371, %v372
    %v375 = vunpack.c.l.s4 1935823168
    %v376 = vunpack.c.0.s8 %v375
    %v377 = vlaneseq
    %v378 = vshrl.u32 %v377, 7
    %v379 = vsub.s32 %v376, %v378
    %v380 = vrot.slane %v373, %v379
    %381 = vrot.lane.b32.xlu0 %v380, 81
    %v382 = vpop.permute.xlu0 %381
    %384 = vst.msk [vmem:[%s285 + $0x2] sm:$0x3] %vm191, %v382
    %385 = vrot.lane.b32.xlu0 %v64, 64
    %v386 = vpop.permute.xlu0 %385
    %387 = vrot.lane.b32.xlu0 %v65, 64
    %v388 = vpop.permute.xlu0 %387
    %v389 = vrot.slane %v386, 1
    %v390 = vrot.slane %v388, 1
    %v391 = vcombine.low %v389, %v390
    %v393 = vunpack.c.l.s4 1935823168
    %v394 = vunpack.c.0.s8 %v393
    %v395 = vlaneseq
    %v396 = vshrl.u32 %v395, 7
    %v397 = vsub.s32 %v394, %v396
    %v398 = vrot.slane %v391, %v397
    %399 = vrot.lane.b32.xlu0 %v398, 100
    %v400 = vpop.permute.xlu0 %399
    %402 = vst.msk [vmem:[%s285 + $0x2] sm:$0x3] %vm210, %v400
    %403 = vrot.lane.b32.xlu0 %v64, 48
    %v404 = vpop.permute.xlu0 %403
    %405 = vrot.lane.b32.xlu0 %v65, 48
    %v406 = vpop.permute.xlu0 %405
    %v407 = vrot.slane %v404, 1
    %v408 = vrot.slane %v406, 1
    %v409 = vcombine.low %v407, %v408
    %v411 = vunpack.c.l.s4 1935823168
    %v412 = vunpack.c.0.s8 %v411
    %v413 = vlaneseq
    %v414 = vshrl.u32 %v413, 7
    %v415 = vsub.s32 %v412, %v414
    %v416 = vrot.slane %v409, %v415
    %417 = vrot.lane.b32.xlu0 %v416, 119
    %v418 = vpop.permute.xlu0 %417
    %v419 = vrot.slane %v418, 6
    %v420 = vsel %vm229, %v419, %v418
    %422 = vst.msk [vmem:[%s285 + $0x2] sm:$0xf] %vm234, %v420
    %423 = vrot.lane.b32.xlu0 %v64, 32
    %v424 = vpop.permute.xlu0 %423
    %425 = vrot.lane.b32.xlu0 %v65, 32
    %v426 = vpop.permute.xlu0 %425
    %v427 = vrot.slane %v424, 1
    %v428 = vrot.slane %v426, 1
    %v429 = vcombine.low %v427, %v428
    %v431 = vunpack.c.l.s4 1935823168
    %v432 = vunpack.c.0.s8 %v431
    %v433 = vlaneseq
    %v434 = vshrl.u32 %v433, 7
    %v435 = vsub.s32 %v432, %v434
    %v436 = vrot.slane %v429, %v435
    %437 = vrot.lane.b32.xlu0 %v436, 10
    %v438 = vpop.permute.xlu0 %437
    %440 = vst.msk [vmem:[%s285 + $0x4] sm:$0x3] %vm253, %v438
    %441 = vrot.lane.b32.xlu0 %v64, 16
    %v442 = vpop.permute.xlu0 %441
    %443 = vrot.lane.b32.xlu0 %v65, 16
    %v444 = vpop.permute.xlu0 %443
    %v445 = vrot.slane %v442, 1
    %v446 = vrot.slane %v444, 1
    %v447 = vcombine.low %v445, %v446
    %v449 = vunpack.c.l.s4 1935823168
    %v450 = vunpack.c.0.s8 %v449
    %v451 = vlaneseq
    %v452 = vshrl.u32 %v451, 7
    %v453 = vsub.s32 %v450, %v452
    %v454 = vrot.slane %v447, %v453
    %455 = vrot.lane.b32.xlu0 %v454, 29
    %v456 = vpop.permute.xlu0 %455
    %458 = vst.msk [vmem:[%s285 + $0x4] sm:$0x3] %vm272, %v456
    %v459 = vld [vmem:[#allocation2] sm:$0x3f]
    %v461 = vcombine.high %v459, %v459
    %v463 = vunpack.c.l.s4 1983009808
    %v464 = vunpack.c.0.s8 %v463
    %v465 = vlaneseq
    %v466 = vshrl.u32 %v465, 7
    %v467 = vsub.s32 %v464, %v466
    %v468 = vrot.slane %v459, %v467
    %v470 = vunpack.c.l.s4 1983009808
    %v471 = vunpack.c.0.s8 %v470
    %v472 = vlaneseq
    %v473 = vshrl.u32 %v472, 7
    %v474 = vsub.s32 %v471, %v473
    %v475 = vrot.slane %v461, %v474
    %v476 = vcombine.high %v468, %v468
    %480 = vrot.lane.b32.xlu0 %v468, 57
    %v481 = vpop.permute.xlu0 %480
    %482 = vrot.lane.b32.xlu0 %v476, 57
    %v483 = vpop.permute.xlu0 %482
    %484 = vrot.lane.b32.xlu0 %v475, 57
    %v485 = vpop.permute.xlu0 %484
    %v486 = vlaneseq
    %v487 = vand.u32 %v486, 127
    %vm488 = vcmp.lt.s32.totalorder %v487, 57
    %v489 = vsel %vm488, %v483, %v485
    %v490 = vsel %vm488, %v481, %v483
    %v491 = vsel %vm488, %v485, %v481
    %s492 = sld [smem:[#allocation3]]
    %v493 = vstv %s492
    %v494 = vmul.f32 %v493, %v491
    %v495 = vmul.f32 %v493, %v490
    %v496 = vmul.f32 %v493, %v489
    %s497 = sld [smem:[#allocation3 + $0x1]]
    %v498 = vstv %s497
    %v499 = vmul.f32 %v498, %v491
    %v500 = vmul.f32 %v498, %v490
    %v501 = vmul.f32 %v498, %v489
    %s502 = sld [smem:[#allocation3 + $0x2]]
    %v503 = vstv %s502
    %v504 = vmul.f32 %v503, %v491
    %v505 = vmul.f32 %v503, %v490
    %v506 = vmul.f32 %v503, %v489
    %s507 = sld [smem:[#allocation3 + $0x3]]
    %v508 = vstv %s507
    %v509 = vmul.f32 %v508, %v491
    %v510 = vmul.f32 %v508, %v490
    %v511 = vmul.f32 %v508, %v489
    %s512 = sld [smem:[#allocation3 + $0x4]]
    %v513 = vstv %s512
    %v514 = vmul.f32 %v513, %v491
    %v515 = vmul.f32 %v513, %v490
    %v516 = vmul.f32 %v513, %v489
    %s517 = sld [smem:[#allocation3 + $0x5]]
    %v518 = vstv %s517
    %v519 = vmul.f32 %v518, %v491
    %v520 = vmul.f32 %v518, %v490
    %v521 = vmul.f32 %v518, %v489
    %s522 = sld [smem:[#allocation3 + $0x6]]
    %v523 = vstv %s522
    %v524 = vmul.f32 %v523, %v491
    %v525 = vmul.f32 %v523, %v490
    %v526 = vmul.f32 %v523, %v489
    %527 = vrot.lane.b32.xlu0 %v468, 38
    %v528 = vpop.permute.xlu0 %527
    %529 = vrot.lane.b32.xlu0 %v476, 38
    %v530 = vpop.permute.xlu0 %529
    %531 = vrot.lane.b32.xlu0 %v475, 38
    %v532 = vpop.permute.xlu0 %531
    %vm533 = vcmp.lt.s32.totalorder %v487, 38
    %v534 = vsel %vm533, %v530, %v532
    %v535 = vsel %vm533, %v528, %v530
    %v536 = vsel %vm533, %v532, %v528
    %s537 = sld [smem:[#allocation3 + $0x7]]
    %v538 = vstv %s537
    %v539 = vmul.f32 %v538, %v536
    %v540 = vmul.f32 %v538, %v535
    %v541 = vmul.f32 %v538, %v534
    %v542 = vadd.f32 %v494, %v539
    %v543 = vadd.f32 %v495, %v540
    %v544 = vadd.f32 %v496, %v541
    %s545 = sld [smem:[#allocation3 + $0x8]]
    %v546 = vstv %s545
    %v547 = vmul.f32 %v546, %v536
    %v548 = vmul.f32 %v546, %v535
    %v549 = vmul.f32 %v546, %v534
    %v550 = vadd.f32 %v499, %v547
    %v551 = vadd.f32 %v500, %v548
    %v552 = vadd.f32 %v501, %v549
    %s553 = sld [smem:[#allocation3 + $0x9]]
    %v554 = vstv %s553
    %v555 = vmul.f32 %v554, %v536
    %v556 = vmul.f32 %v554, %v535
    %v557 = vmul.f32 %v554, %v534
    %v558 = vadd.f32 %v504, %v555
    %v559 = vadd.f32 %v505, %v556
    %v560 = vadd.f32 %v506, %v557
    %s561 = sld [smem:[#allocation3 + $0xa]]
    %v562 = vstv %s561
    %v563 = vmul.f32 %v562, %v536
    %v564 = vmul.f32 %v562, %v535
    %v565 = vmul.f32 %v562, %v534
    %v566 = vadd.f32 %v509, %v563
    %v567 = vadd.f32 %v510, %v564
    %v568 = vadd.f32 %v511, %v565
    %s569 = sld [smem:[#allocation3 + $0xb]]
    %v570 = vstv %s569
    %v571 = vmul.f32 %v570, %v536
    %v572 = vmul.f32 %v570, %v535
    %v573 = vmul.f32 %v570, %v534
    %v574 = vadd.f32 %v514, %v571
    %v575 = vadd.f32 %v515, %v572
    %v576 = vadd.f32 %v516, %v573
    %s577 = sld [smem:[#allocation3 + $0xc]]
    %v578 = vstv %s577
    %v579 = vmul.f32 %v578, %v536
    %v580 = vmul.f32 %v578, %v535
    %v581 = vmul.f32 %v578, %v534
    %v582 = vadd.f32 %v519, %v579
    %v583 = vadd.f32 %v520, %v580
    %v584 = vadd.f32 %v521, %v581
    %s585 = sld [smem:[#allocation3 + $0xd]]
    %v586 = vstv %s585
    %v587 = vmul.f32 %v586, %v536
    %v588 = vmul.f32 %v586, %v535
    %v589 = vmul.f32 %v586, %v534
    %v590 = vadd.f32 %v524, %v587
    %v591 = vadd.f32 %v525, %v588
    %v592 = vadd.f32 %v526, %v589
    %593 = vrot.lane.b32.xlu0 %v468, 19
    %v594 = vpop.permute.xlu0 %593
    %595 = vrot.lane.b32.xlu0 %v476, 19
    %v596 = vpop.permute.xlu0 %595
    %597 = vrot.lane.b32.xlu0 %v475, 19
    %v598 = vpop.permute.xlu0 %597
    %vm599 = vcmp.lt.s32.totalorder %v487, 19
    %v600 = vsel %vm599, %v596, %v598
    %v601 = vsel %vm599, %v594, %v596
    %v602 = vsel %vm599, %v598, %v594
    %s603 = sld [smem:[#allocation3 + $0xe]]
    %v604 = vstv %s603
    %v605 = vmul.f32 %v604, %v602
    %v606 = vmul.f32 %v604, %v601
    %v607 = vmul.f32 %v604, %v600
    %v608 = vadd.f32 %v542, %v605
    %v609 = vadd.f32 %v543, %v606
    %v610 = vadd.f32 %v544, %v607
    %s611 = sld [smem:[#allocation3 + $0xf]]
    %v612 = vstv %s611
    %v613 = vmul.f32 %v612, %v602
    %v614 = vmul.f32 %v612, %v601
    %v615 = vmul.f32 %v612, %v600
    %v616 = vadd.f32 %v550, %v613
    %v617 = vadd.f32 %v551, %v614
    %v618 = vadd.f32 %v552, %v615
    %s619 = sld [smem:[#allocation3 + $0x10]]
    %v620 = vstv %s619
    %v621 = vmul.f32 %v620, %v602
    %v622 = vmul.f32 %v620, %v601
    %v623 = vmul.f32 %v620, %v600
    %v624 = vadd.f32 %v558, %v621
    %v625 = vadd.f32 %v559, %v622
    %v626 = vadd.f32 %v560, %v623
    %s627 = sld [smem:[#allocation3 + $0x11]]
    %v628 = vstv %s627
    %v629 = vmul.f32 %v628, %v602
    %v630 = vmul.f32 %v628, %v601
    %v631 = vmul.f32 %v628, %v600
    %v632 = vadd.f32 %v566, %v629
    %v633 = vadd.f32 %v567, %v630
    %v634 = vadd.f32 %v568, %v631
    %s635 = sld [smem:[#allocation3 + $0x12]]
    %v636 = vstv %s635
    %v637 = vmul.f32 %v636, %v602
    %v638 = vmul.f32 %v636, %v601
    %v639 = vmul.f32 %v636, %v600
    %v640 = vadd.f32 %v574, %v637
    %v641 = vadd.f32 %v575, %v638
    %v642 = vadd.f32 %v576, %v639
    %s643 = sld [smem:[#allocation3 + $0x13]]
    %v644 = vstv %s643
    %v645 = vmul.f32 %v644, %v602
    %v646 = vmul.f32 %v644, %v601
    %v647 = vmul.f32 %v644, %v600
    %v648 = vadd.f32 %v582, %v645
    %v649 = vadd.f32 %v583, %v646
    %v650 = vadd.f32 %v584, %v647
    %s651 = sld [smem:[#allocation3 + $0x14]]
    %v652 = vstv %s651
    %v653 = vmul.f32 %v652, %v602
    %v654 = vmul.f32 %v652, %v601
    %v655 = vmul.f32 %v652, %v600
    %v656 = vadd.f32 %v590, %v653
    %v657 = vadd.f32 %v591, %v654
    %v658 = vadd.f32 %v592, %v655
    %s659 = sld [smem:[#allocation3 + $0x15]]
    %v660 = vstv %s659
    %v661 = vmul.f32 %v660, %v459
    %v663 = vcombine.high %v661, %v661
    %v665 = vunpack.c.l.s4 1983009808
    %v666 = vunpack.c.0.s8 %v665
    %v667 = vlaneseq
    %v668 = vshrl.u32 %v667, 7
    %v669 = vsub.s32 %v666, %v668
    %v670 = vrot.slane %v661, %v669
    %v672 = vunpack.c.l.s4 1983009808
    %v673 = vunpack.c.0.s8 %v672
    %v674 = vlaneseq
    %v675 = vshrl.u32 %v674, 7
    %v676 = vsub.s32 %v673, %v675
    %v677 = vrot.slane %v663, %v676
    %v678 = vcombine.high %v670, %v670
    %v682 = vadd.f32 %v608, %v670
    %v683 = vadd.f32 %v609, %v678
    %v684 = vadd.f32 %v610, %v677
    %s685 = sld [smem:[#allocation3 + $0x16]]
    %v686 = vstv %s685
    %v687 = vmul.f32 %v686, %v459
    %v689 = vcombine.high %v687, %v687
    %v691 = vunpack.c.l.s4 1983009808
    %v692 = vunpack.c.0.s8 %v691
    %v693 = vlaneseq
    %v694 = vshrl.u32 %v693, 7
    %v695 = vsub.s32 %v692, %v694
    %v696 = vrot.slane %v687, %v695
    %v698 = vunpack.c.l.s4 1983009808
    %v699 = vunpack.c.0.s8 %v698
    %v700 = vlaneseq
    %v701 = vshrl.u32 %v700, 7
    %v702 = vsub.s32 %v699, %v701
    %v703 = vrot.slane %v689, %v702
    %v704 = vcombine.high %v696, %v696
    %v708 = vadd.f32 %v616, %v696
    %v709 = vadd.f32 %v617, %v704
    %v710 = vadd.f32 %v618, %v703
    %s711 = sld [smem:[#allocation3 + $0x17]]
    %v712 = vstv %s711
    %v713 = vmul.f32 %v712, %v459
    %v715 = vcombine.high %v713, %v713
    %v717 = vunpack.c.l.s4 1983009808
    %v718 = vunpack.c.0.s8 %v717
    %v719 = vlaneseq
    %v720 = vshrl.u32 %v719, 7
    %v721 = vsub.s32 %v718, %v720
    %v722 = vrot.slane %v713, %v721
    %v724 = vunpack.c.l.s4 1983009808
    %v725 = vunpack.c.0.s8 %v724
    %v726 = vlaneseq
    %v727 = vshrl.u32 %v726, 7
    %v728 = vsub.s32 %v725, %v727
    %v729 = vrot.slane %v715, %v728
    %v730 = vcombine.high %v722, %v722
    %v734 = vadd.f32 %v624, %v722
    %v735 = vadd.f32 %v625, %v730
    %v736 = vadd.f32 %v626, %v729
    %s737 = sld [smem:[#allocation3 + $0x18]]
    %v738 = vstv %s737
    %v739 = vmul.f32 %v738, %v459
    %v741 = vcombine.high %v739, %v739
    %v743 = vunpack.c.l.s4 1983009808
    %v744 = vunpack.c.0.s8 %v743
    %v745 = vlaneseq
    %v746 = vshrl.u32 %v745, 7
    %v747 = vsub.s32 %v744, %v746
    %v748 = vrot.slane %v739, %v747
    %v750 = vunpack.c.l.s4 1983009808
    %v751 = vunpack.c.0.s8 %v750
    %v752 = vlaneseq
    %v753 = vshrl.u32 %v752, 7
    %v754 = vsub.s32 %v751, %v753
    %v755 = vrot.slane %v741, %v754
    %v756 = vcombine.high %v748, %v748
    %v760 = vadd.f32 %v632, %v748
    %v761 = vadd.f32 %v633, %v756
    %v762 = vadd.f32 %v634, %v755
    %s763 = sld [smem:[#allocation3 + $0x19]]
    %v764 = vstv %s763
    %v765 = vmul.f32 %v764, %v459
    %v767 = vcombine.high %v765, %v765
    %v769 = vunpack.c.l.s4 1983009808
    %v770 = vunpack.c.0.s8 %v769
    %v771 = vlaneseq
    %v772 = vshrl.u32 %v771, 7
    %v773 = vsub.s32 %v770, %v772
    %v774 = vrot.slane %v765, %v773
    %v776 = vunpack.c.l.s4 1983009808
    %v777 = vunpack.c.0.s8 %v776
    %v778 = vlaneseq
    %v779 = vshrl.u32 %v778, 7
    %v780 = vsub.s32 %v777, %v779
    %v781 = vrot.slane %v767, %v780
    %v782 = vcombine.high %v774, %v774
    %v786 = vadd.f32 %v640, %v774
    %v787 = vadd.f32 %v641, %v782
    %v788 = vadd.f32 %v642, %v781
    %s789 = sld [smem:[#allocation3 + $0x1a]]
    %v790 = vstv %s789
    %v791 = vmul.f32 %v790, %v459
    %v793 = vcombine.high %v791, %v791
    %v795 = vunpack.c.l.s4 1983009808
    %v796 = vunpack.c.0.s8 %v795
    %v797 = vlaneseq
    %v798 = vshrl.u32 %v797, 7
    %v799 = vsub.s32 %v796, %v798
    %v800 = vrot.slane %v791, %v799
    %v802 = vunpack.c.l.s4 1983009808
    %v803 = vunpack.c.0.s8 %v802
    %v804 = vlaneseq
    %v805 = vshrl.u32 %v804, 7
    %v806 = vsub.s32 %v803, %v805
    %v807 = vrot.slane %v793, %v806
    %v808 = vcombine.high %v800, %v800
    %v812 = vadd.f32 %v648, %v800
    %v813 = vadd.f32 %v649, %v808
    %v814 = vadd.f32 %v650, %v807
    %s815 = sld [smem:[#allocation3 + $0x1b]]
    %v816 = vstv %s815
    %v817 = vmul.f32 %v816, %v459
    %v819 = vcombine.high %v817, %v817
    %v821 = vunpack.c.l.s4 1983009808
    %v822 = vunpack.c.0.s8 %v821
    %v823 = vlaneseq
    %v824 = vshrl.u32 %v823, 7
    %v825 = vsub.s32 %v822, %v824
    %v826 = vrot.slane %v817, %v825
    %v828 = vunpack.c.l.s4 1983009808
    %v829 = vunpack.c.0.s8 %v828
    %v830 = vlaneseq
    %v831 = vshrl.u32 %v830, 7
    %v832 = vsub.s32 %v829, %v831
    %v833 = vrot.slane %v819, %v832
    %v834 = vcombine.high %v826, %v826
    %v838 = vadd.f32 %v656, %v826
    %v839 = vadd.f32 %v657, %v834
    %v840 = vadd.f32 %v658, %v833
    %841 = vrot.lane.b32.xlu0 %v468, 109
    %v842 = vpop.permute.xlu0 %841
    %843 = vrot.lane.b32.xlu0 %v476, 109
    %v844 = vpop.permute.xlu0 %843
    %845 = vrot.lane.b32.xlu0 %v475, 109
    %v846 = vpop.permute.xlu0 %845
    %vm847 = vcmp.lt.s32.totalorder %v487, 109
    %v848 = vsel %vm847, %v844, %v846
    %v849 = vsel %vm847, %v842, %v844
    %v850 = vsel %vm847, %v846, %v842
    %s851 = sld [smem:[#allocation3 + $0x1c]]
    %v852 = vstv %s851
    %v853 = vmul.f32 %v852, %v849
    %v854 = vmul.f32 %v852, %v848
    %v855 = vmul.f32 %v852, %v850
    %v856 = vadd.f32 %v682, %v853
    %v857 = vadd.f32 %v683, %v854
    %v858 = vadd.f32 %v684, %v855
    %s859 = sld [smem:[#allocation3 + $0x1d]]
    %v860 = vstv %s859
    %v861 = vmul.f32 %v860, %v849
    %v862 = vmul.f32 %v860, %v848
    %v863 = vmul.f32 %v860, %v850
    %v864 = vadd.f32 %v708, %v861
    %v865 = vadd.f32 %v709, %v862
    %v866 = vadd.f32 %v710, %v863
    %s867 = sld [smem:[#allocation3 + $0x1e]]
    %v868 = vstv %s867
    %v869 = vmul.f32 %v868, %v849
    %v870 = vmul.f32 %v868, %v848
    %v871 = vmul.f32 %v868, %v850
    %v872 = vadd.f32 %v734, %v869
    %v873 = vadd.f32 %v735, %v870
    %v874 = vadd.f32 %v736, %v871
    %s875 = sld [smem:[#allocation3 + $0x1f]]
    %v876 = vstv %s875
    %v877 = vmul.f32 %v876, %v849
    %v878 = vmul.f32 %v876, %v848
    %v879 = vmul.f32 %v876, %v850
    %v880 = vadd.f32 %v760, %v877
    %v881 = vadd.f32 %v761, %v878
    %v882 = vadd.f32 %v762, %v879
    %s883 = sld [smem:[#allocation3 + $0x20]]
    %v884 = vstv %s883
    %v885 = vmul.f32 %v884, %v849
    %v886 = vmul.f32 %v884, %v848
    %v887 = vmul.f32 %v884, %v850
    %v888 = vadd.f32 %v786, %v885
    %v889 = vadd.f32 %v787, %v886
    %v890 = vadd.f32 %v788, %v887
    %s891 = sld [smem:[#allocation3 + $0x21]]
    %v892 = vstv %s891
    %v893 = vmul.f32 %v892, %v849
    %v894 = vmul.f32 %v892, %v848
    %v895 = vmul.f32 %v892, %v850
    %v896 = vadd.f32 %v812, %v893
    %v897 = vadd.f32 %v813, %v894
    %v898 = vadd.f32 %v814, %v895
    %s899 = sld [smem:[#allocation3 + $0x22]]
    %v900 = vstv %s899
    %v901 = vmul.f32 %v900, %v849
    %v902 = vmul.f32 %v900, %v848
    %v903 = vmul.f32 %v900, %v850
    %v904 = vadd.f32 %v838, %v901
    %v905 = vadd.f32 %v839, %v902
    %v906 = vadd.f32 %v840, %v903
    %907 = vrot.lane.b32.xlu0 %v468, 90
    %v908 = vpop.permute.xlu0 %907
    %909 = vrot.lane.b32.xlu0 %v476, 90
    %v910 = vpop.permute.xlu0 %909
    %911 = vrot.lane.b32.xlu0 %v475, 90
    %v912 = vpop.permute.xlu0 %911
    %vm913 = vcmp.lt.s32.totalorder %v487, 90
    %v914 = vsel %vm913, %v910, %v912
    %v915 = vsel %vm913, %v908, %v910
    %v916 = vsel %vm913, %v912, %v908
    %s917 = sld [smem:[#allocation3 + $0x23]]
    %v918 = vstv %s917
    %v919 = vmul.f32 %v918, %v915
    %v920 = vmul.f32 %v918, %v914
    %v921 = vmul.f32 %v918, %v916
    %v922 = vadd.f32 %v856, %v919
    %v923 = vadd.f32 %v857, %v920
    %v924 = vadd.f32 %v858, %v921
    %s925 = sld [smem:[#allocation3 + $0x24]]
    %v926 = vstv %s925
    %v927 = vmul.f32 %v926, %v915
    %v928 = vmul.f32 %v926, %v914
    %v929 = vmul.f32 %v926, %v916
    %v930 = vadd.f32 %v864, %v927
    %v931 = vadd.f32 %v865, %v928
    %v932 = vadd.f32 %v866, %v929
    %s933 = sld [smem:[#allocation3 + $0x25]]
    %v934 = vstv %s933
    %v935 = vmul.f32 %v934, %v915
    %v936 = vmul.f32 %v934, %v914
    %v937 = vmul.f32 %v934, %v916
    %v938 = vadd.f32 %v872, %v935
    %v939 = vadd.f32 %v873, %v936
    %v940 = vadd.f32 %v874, %v937
    %s941 = sld [smem:[#allocation3 + $0x26]]
    %v942 = vstv %s941
    %v943 = vmul.f32 %v942, %v915
    %v944 = vmul.f32 %v942, %v914
    %v945 = vmul.f32 %v942, %v916
    %v946 = vadd.f32 %v880, %v943
    %v947 = vadd.f32 %v881, %v944
    %v948 = vadd.f32 %v882, %v945
    %s949 = sld [smem:[#allocation3 + $0x27]]
    %v950 = vstv %s949
    %v951 = vmul.f32 %v950, %v915
    %v952 = vmul.f32 %v950, %v914
    %v953 = vmul.f32 %v950, %v916
    %v954 = vadd.f32 %v888, %v951
    %v955 = vadd.f32 %v889, %v952
    %v956 = vadd.f32 %v890, %v953
    %s957 = sld [smem:[#allocation3 + $0x28]]
    %v958 = vstv %s957
    %v959 = vmul.f32 %v958, %v915
    %v960 = vmul.f32 %v958, %v914
    %v961 = vmul.f32 %v958, %v916
    %v962 = vadd.f32 %v896, %v959
    %v963 = vadd.f32 %v897, %v960
    %v964 = vadd.f32 %v898, %v961
    %s965 = sld [smem:[#allocation3 + $0x29]]
    %v966 = vstv %s965
    %v967 = vmul.f32 %v966, %v915
    %v968 = vmul.f32 %v966, %v914
    %v969 = vmul.f32 %v966, %v916
    %v970 = vadd.f32 %v904, %v967
    %v971 = vadd.f32 %v905, %v968
    %v972 = vadd.f32 %v906, %v969
    %973 = vrot.lane.b32.xlu0 %v468, 71
    %v974 = vpop.permute.xlu0 %973
    %975 = vrot.lane.b32.xlu0 %v476, 71
    %v976 = vpop.permute.xlu0 %975
    %977 = vrot.lane.b32.xlu0 %v475, 71
    %v978 = vpop.permute.xlu0 %977
    %vm979 = vcmp.lt.s32.totalorder %v487, 71
    %v980 = vsel %vm979, %v976, %v978
    %v981 = vsel %vm979, %v974, %v976
    %v982 = vsel %vm979, %v978, %v974
    %s983 = sld [smem:[#allocation3 + $0x2a]]
    %v984 = vstv %s983
    %v985 = vmul.f32 %v984, %v981
    %v986 = vmul.f32 %v984, %v980
    %v987 = vmul.f32 %v984, %v982
    %v988 = vadd.f32 %v922, %v985
    %v989 = vadd.f32 %v923, %v986
    %v990 = vadd.f32 %v924, %v987
    %s991 = sld [smem:[#allocation3 + $0x2b]]
    %v992 = vstv %s991
    %v993 = vmul.f32 %v992, %v981
    %v994 = vmul.f32 %v992, %v980
    %v995 = vmul.f32 %v992, %v982
    %v996 = vadd.f32 %v930, %v993
    %v997 = vadd.f32 %v931, %v994
    %v998 = vadd.f32 %v932, %v995
    %s999 = sld [smem:[#allocation3 + $0x2c]]
    %v1000 = vstv %s999
    %v1001 = vmul.f32 %v1000, %v981
    %v1002 = vmul.f32 %v1000, %v980
    %v1003 = vmul.f32 %v1000, %v982
    %v1004 = vadd.f32 %v938, %v1001
    %v1005 = vadd.f32 %v939, %v1002
    %v1006 = vadd.f32 %v940, %v1003
    %s1007 = sld [smem:[#allocation3 + $0x2d]]
    %v1008 = vstv %s1007
    %v1009 = vmul.f32 %v1008, %v981
    %v1010 = vmul.f32 %v1008, %v980
    %v1011 = vmul.f32 %v1008, %v982
    %v1012 = vadd.f32 %v946, %v1009
    %v1013 = vadd.f32 %v947, %v1010
    %v1014 = vadd.f32 %v948, %v1011
    %s1015 = sld [smem:[#allocation3 + $0x2e]]
    %v1016 = vstv %s1015
    %v1017 = vmul.f32 %v1016, %v981
    %v1018 = vmul.f32 %v1016, %v980
    %v1019 = vmul.f32 %v1016, %v982
    %v1020 = vadd.f32 %v954, %v1017
    %v1021 = vadd.f32 %v955, %v1018
    %v1022 = vadd.f32 %v956, %v1019
    %s1023 = sld [smem:[#allocation3 + $0x2f]]
    %v1024 = vstv %s1023
    %v1025 = vmul.f32 %v1024, %v981
    %v1026 = vmul.f32 %v1024, %v980
    %v1027 = vmul.f32 %v1024, %v982
    %v1028 = vadd.f32 %v962, %v1025
    %v1029 = vadd.f32 %v963, %v1026
    %v1030 = vadd.f32 %v964, %v1027
    %s1031 = sld [smem:[#allocation3 + $0x30]]
    %v1032 = vstv %s1031
    %v1033 = vmul.f32 %v1032, %v981
    %v1034 = vmul.f32 %v1032, %v980
    %v1035 = vmul.f32 %v1032, %v982
    %v1036 = vadd.f32 %v970, %v1033
    %v1037 = vadd.f32 %v971, %v1034
    %v1038 = vadd.f32 %v972, %v1035
    %v1039 = vld [vmem:[%s285] sm:$0x3f]
    %v1041 = vcombine.high %v1039, %v1039
    %v1043 = vunpack.c.l.s4 1983009808
    %v1044 = vunpack.c.0.s8 %v1043
    %v1045 = vlaneseq
    %v1046 = vshrl.u32 %v1045, 7
    %v1047 = vsub.s32 %v1044, %v1046
    %v1048 = vrot.slane %v1039, %v1047
    %v1050 = vunpack.c.l.s4 1983009808
    %v1051 = vunpack.c.0.s8 %v1050
    %v1052 = vlaneseq
    %v1053 = vshrl.u32 %v1052, 7
    %v1054 = vsub.s32 %v1051, %v1053
    %v1055 = vrot.slane %v1041, %v1054
    %v1056 = vcombine.high %v1048, %v1048
    %1060 = vrot.lane.b32.xlu0 %v1048, 57
    %v1061 = vpop.permute.xlu0 %1060
    %1062 = vrot.lane.b32.xlu0 %v1056, 57
    %v1063 = vpop.permute.xlu0 %1062
    %1064 = vrot.lane.b32.xlu0 %v1055, 57
    %v1065 = vpop.permute.xlu0 %1064
    %v1066 = vsel %vm488, %v1063, %v1065
    %v1067 = vsel %vm488, %v1061, %v1063
    %v1068 = vsel %vm488, %v1065, %v1061
    %s1069 = sld [smem:[#allocation3 + $0x31]]
    %v1070 = vstv %s1069
    %v1071 = vmul.f32 %v1070, %v1068
    %v1072 = vmul.f32 %v1070, %v1067
    %v1073 = vmul.f32 %v1070, %v1066
    %v1074 = vadd.f32 %v988, %v1071
    %v1075 = vadd.f32 %v989, %v1072
    %v1076 = vadd.f32 %v990, %v1073
    %s1077 = sld [smem:[#allocation3 + $0x32]]
    %v1078 = vstv %s1077
    %v1079 = vmul.f32 %v1078, %v1068
    %v1080 = vmul.f32 %v1078, %v1067
    %v1081 = vmul.f32 %v1078, %v1066
    %v1082 = vadd.f32 %v996, %v1079
    %v1083 = vadd.f32 %v997, %v1080
    %v1084 = vadd.f32 %v998, %v1081
    %s1085 = sld [smem:[#allocation3 + $0x33]]
    %v1086 = vstv %s1085
    %v1087 = vmul.f32 %v1086, %v1068
    %v1088 = vmul.f32 %v1086, %v1067
    %v1089 = vmul.f32 %v1086, %v1066
    %v1090 = vadd.f32 %v1004, %v1087
    %v1091 = vadd.f32 %v1005, %v1088
    %v1092 = vadd.f32 %v1006, %v1089
    %s1093 = sld [smem:[#allocation3 + $0x34]]
    %v1094 = vstv %s1093
    %v1095 = vmul.f32 %v1094, %v1068
    %v1096 = vmul.f32 %v1094, %v1067
    %v1097 = vmul.f32 %v1094, %v1066
    %v1098 = vadd.f32 %v1012, %v1095
    %v1099 = vadd.f32 %v1013, %v1096
    %v1100 = vadd.f32 %v1014, %v1097
    %s1101 = sld [smem:[#allocation3 + $0x35]]
    %v1102 = vstv %s1101
    %v1103 = vmul.f32 %v1102, %v1068
    %v1104 = vmul.f32 %v1102, %v1067
    %v1105 = vmul.f32 %v1102, %v1066
    %v1106 = vadd.f32 %v1020, %v1103
    %v1107 = vadd.f32 %v1021, %v1104
    %v1108 = vadd.f32 %v1022, %v1105
    %s1109 = sld [smem:[#allocation3 + $0x36]]
    %v1110 = vstv %s1109
    %v1111 = vmul.f32 %v1110, %v1068
    %v1112 = vmul.f32 %v1110, %v1067
    %v1113 = vmul.f32 %v1110, %v1066
    %v1114 = vadd.f32 %v1028, %v1111
    %v1115 = vadd.f32 %v1029, %v1112
    %v1116 = vadd.f32 %v1030, %v1113
    %s1117 = sld [smem:[#allocation3 + $0x37]]
    %v1118 = vstv %s1117
    %v1119 = vmul.f32 %v1118, %v1068
    %v1120 = vmul.f32 %v1118, %v1067
    %v1121 = vmul.f32 %v1118, %v1066
    %v1122 = vadd.f32 %v1036, %v1119
    %v1123 = vadd.f32 %v1037, %v1120
    %v1124 = vadd.f32 %v1038, %v1121
    %1125 = vrot.lane.b32.xlu0 %v1048, 38
    %v1126 = vpop.permute.xlu0 %1125
    %1127 = vrot.lane.b32.xlu0 %v1056, 38
    %v1128 = vpop.permute.xlu0 %1127
    %1129 = vrot.lane.b32.xlu0 %v1055, 38
    %v1130 = vpop.permute.xlu0 %1129
    %v1131 = vsel %vm533, %v1128, %v1130
    %v1132 = vsel %vm533, %v1126, %v1128
    %v1133 = vsel %vm533, %v1130, %v1126
    %s1134 = sld [smem:[#allocation3 + $0x38]]
    %v1135 = vstv %s1134
    %v1136 = vmul.f32 %v1135, %v1133
    %v1137 = vmul.f32 %v1135, %v1132
    %v1138 = vmul.f32 %v1135, %v1131
    %v1139 = vadd.f32 %v1074, %v1136
    %v1140 = vadd.f32 %v1075, %v1137
    %v1141 = vadd.f32 %v1076, %v1138
    %s1142 = sld [smem:[#allocation3 + $0x39]]
    %v1143 = vstv %s1142
    %v1144 = vmul.f32 %v1143, %v1133
    %v1145 = vmul.f32 %v1143, %v1132
    %v1146 = vmul.f32 %v1143, %v1131
    %v1147 = vadd.f32 %v1082, %v1144
    %v1148 = vadd.f32 %v1083, %v1145
    %v1149 = vadd.f32 %v1084, %v1146
    %s1150 = sld [smem:[#allocation3 + $0x3a]]
    %v1151 = vstv %s1150
    %v1152 = vmul.f32 %v1151, %v1133
    %v1153 = vmul.f32 %v1151, %v1132
    %v1154 = vmul.f32 %v1151, %v1131
    %v1155 = vadd.f32 %v1090, %v1152
    %v1156 = vadd.f32 %v1091, %v1153
    %v1157 = vadd.f32 %v1092, %v1154
    %s1158 = sld [smem:[#allocation3 + $0x3b]]
    %v1159 = vstv %s1158
    %v1160 = vmul.f32 %v1159, %v1133
    %v1161 = vmul.f32 %v1159, %v1132
    %v1162 = vmul.f32 %v1159, %v1131
    %v1163 = vadd.f32 %v1098, %v1160
    %v1164 = vadd.f32 %v1099, %v1161
    %v1165 = vadd.f32 %v1100, %v1162
    %s1166 = sld [smem:[#allocation3 + $0x3c]]
    %v1167 = vstv %s1166
    %v1168 = vmul.f32 %v1167, %v1133
    %v1169 = vmul.f32 %v1167, %v1132
    %v1170 = vmul.f32 %v1167, %v1131
    %v1171 = vadd.f32 %v1106, %v1168
    %v1172 = vadd.f32 %v1107, %v1169
    %v1173 = vadd.f32 %v1108, %v1170
    %s1174 = sld [smem:[#allocation3 + $0x3d]]
    %v1175 = vstv %s1174
    %v1176 = vmul.f32 %v1175, %v1133
    %v1177 = vmul.f32 %v1175, %v1132
    %v1178 = vmul.f32 %v1175, %v1131
    %v1179 = vadd.f32 %v1114, %v1176
    %v1180 = vadd.f32 %v1115, %v1177
    %v1181 = vadd.f32 %v1116, %v1178
    %s1182 = sld [smem:[#allocation3 + $0x3e]]
    %v1183 = vstv %s1182
    %v1184 = vmul.f32 %v1183, %v1133
    %v1185 = vmul.f32 %v1183, %v1132
    %v1186 = vmul.f32 %v1183, %v1131
    %v1187 = vadd.f32 %v1122, %v1184
    %v1188 = vadd.f32 %v1123, %v1185
    %v1189 = vadd.f32 %v1124, %v1186
    %1190 = vrot.lane.b32.xlu0 %v1048, 19
    %v1191 = vpop.permute.xlu0 %1190
    %1192 = vrot.lane.b32.xlu0 %v1056, 19
    %v1193 = vpop.permute.xlu0 %1192
    %1194 = vrot.lane.b32.xlu0 %v1055, 19
    %v1195 = vpop.permute.xlu0 %1194
    %v1196 = vsel %vm599, %v1193, %v1195
    %v1197 = vsel %vm599, %v1191, %v1193
    %v1198 = vsel %vm599, %v1195, %v1191
    %s1199 = sld [smem:[#allocation3 + $0x3f]]
    %v1200 = vstv %s1199
    %v1201 = vmul.f32 %v1200, %v1198
    %v1202 = vmul.f32 %v1200, %v1197
    %v1203 = vmul.f32 %v1200, %v1196
    %v1204 = vadd.f32 %v1139, %v1201
    %v1205 = vadd.f32 %v1140, %v1202
    %v1206 = vadd.f32 %v1141, %v1203
    %s1207 = sld [smem:[#allocation3 + $0x40]]
    %v1208 = vstv %s1207
    %v1209 = vmul.f32 %v1208, %v1198
    %v1210 = vmul.f32 %v1208, %v1197
    %v1211 = vmul.f32 %v1208, %v1196
    %v1212 = vadd.f32 %v1147, %v1209
    %v1213 = vadd.f32 %v1148, %v1210
    %v1214 = vadd.f32 %v1149, %v1211
    %s1215 = sld [smem:[#allocation3 + $0x41]]
    %v1216 = vstv %s1215
    %v1217 = vmul.f32 %v1216, %v1198
    %v1218 = vmul.f32 %v1216, %v1197
    %v1219 = vmul.f32 %v1216, %v1196
    %v1220 = vadd.f32 %v1155, %v1217
    %v1221 = vadd.f32 %v1156, %v1218
    %v1222 = vadd.f32 %v1157, %v1219
    %s1223 = sld [smem:[#allocation3 + $0x42]]
    %v1224 = vstv %s1223
    %v1225 = vmul.f32 %v1224, %v1198
    %v1226 = vmul.f32 %v1224, %v1197
    %v1227 = vmul.f32 %v1224, %v1196
    %v1228 = vadd.f32 %v1163, %v1225
    %v1229 = vadd.f32 %v1164, %v1226
    %v1230 = vadd.f32 %v1165, %v1227
    %s1231 = sld [smem:[#allocation3 + $0x43]]
    %v1232 = vstv %s1231
    %v1233 = vmul.f32 %v1232, %v1198
    %v1234 = vmul.f32 %v1232, %v1197
    %v1235 = vmul.f32 %v1232, %v1196
    %v1236 = vadd.f32 %v1171, %v1233
    %v1237 = vadd.f32 %v1172, %v1234
    %v1238 = vadd.f32 %v1173, %v1235
    %s1239 = sld [smem:[#allocation3 + $0x44]]
    %v1240 = vstv %s1239
    %v1241 = vmul.f32 %v1240, %v1198
    %v1242 = vmul.f32 %v1240, %v1197
    %v1243 = vmul.f32 %v1240, %v1196
    %v1244 = vadd.f32 %v1179, %v1241
    %v1245 = vadd.f32 %v1180, %v1242
    %v1246 = vadd.f32 %v1181, %v1243
    %s1247 = sld [smem:[#allocation3 + $0x45]]
    %v1248 = vstv %s1247
    %v1249 = vmul.f32 %v1248, %v1198
    %v1250 = vmul.f32 %v1248, %v1197
    %v1251 = vmul.f32 %v1248, %v1196
    %v1252 = vadd.f32 %v1187, %v1249
    %v1253 = vadd.f32 %v1188, %v1250
    %v1254 = vadd.f32 %v1189, %v1251
    %s1255 = sld [smem:[#allocation3 + $0x46]]
    %v1256 = vstv %s1255
    %v1257 = vmul.f32 %v1256, %v1039
    %v1259 = vcombine.high %v1257, %v1257
    %v1261 = vunpack.c.l.s4 1983009808
    %v1262 = vunpack.c.0.s8 %v1261
    %v1263 = vlaneseq
    %v1264 = vshrl.u32 %v1263, 7
    %v1265 = vsub.s32 %v1262, %v1264
    %v1266 = vrot.slane %v1257, %v1265
    %v1268 = vunpack.c.l.s4 1983009808
    %v1269 = vunpack.c.0.s8 %v1268
    %v1270 = vlaneseq
    %v1271 = vshrl.u32 %v1270, 7
    %v1272 = vsub.s32 %v1269, %v1271
    %v1273 = vrot.slane %v1259, %v1272
    %v1274 = vcombine.high %v1266, %v1266
    %v1278 = vadd.f32 %v1204, %v1266
    %v1279 = vadd.f32 %v1205, %v1274
    %v1280 = vadd.f32 %v1206, %v1273
    %s1281 = sld [smem:[#allocation3 + $0x47]]
    %v1282 = vstv %s1281
    %v1283 = vmul.f32 %v1282, %v1039
    %v1285 = vcombine.high %v1283, %v1283
    %v1287 = vunpack.c.l.s4 1983009808
    %v1288 = vunpack.c.0.s8 %v1287
    %v1289 = vlaneseq
    %v1290 = vshrl.u32 %v1289, 7
    %v1291 = vsub.s32 %v1288, %v1290
    %v1292 = vrot.slane %v1283, %v1291
    %v1294 = vunpack.c.l.s4 1983009808
    %v1295 = vunpack.c.0.s8 %v1294
    %v1296 = vlaneseq
    %v1297 = vshrl.u32 %v1296, 7
    %v1298 = vsub.s32 %v1295, %v1297
    %v1299 = vrot.slane %v1285, %v1298
    %v1300 = vcombine.high %v1292, %v1292
    %v1304 = vadd.f32 %v1212, %v1292
    %v1305 = vadd.f32 %v1213, %v1300
    %v1306 = vadd.f32 %v1214, %v1299
    %s1307 = sld [smem:[#allocation3 + $0x48]]
    %v1308 = vstv %s1307
    %v1309 = vmul.f32 %v1308, %v1039
    %v1311 = vcombine.high %v1309, %v1309
    %v1313 = vunpack.c.l.s4 1983009808
    %v1314 = vunpack.c.0.s8 %v1313
    %v1315 = vlaneseq
    %v1316 = vshrl.u32 %v1315, 7
    %v1317 = vsub.s32 %v1314, %v1316
    %v1318 = vrot.slane %v1309, %v1317
    %v1320 = vunpack.c.l.s4 1983009808
    %v1321 = vunpack.c.0.s8 %v1320
    %v1322 = vlaneseq
    %v1323 = vshrl.u32 %v1322, 7
    %v1324 = vsub.s32 %v1321, %v1323
    %v1325 = vrot.slane %v1311, %v1324
    %v1326 = vcombine.high %v1318, %v1318
    %v1330 = vadd.f32 %v1220, %v1318
    %v1331 = vadd.f32 %v1221, %v1326
    %v1332 = vadd.f32 %v1222, %v1325
    %s1333 = sld [smem:[#allocation3 + $0x49]]
    %v1334 = vstv %s1333
    %v1335 = vmul.f32 %v1334, %v1039
    %v1337 = vcombine.high %v1335, %v1335
    %v1339 = vunpack.c.l.s4 1983009808
    %v1340 = vunpack.c.0.s8 %v1339
    %v1341 = vlaneseq
    %v1342 = vshrl.u32 %v1341, 7
    %v1343 = vsub.s32 %v1340, %v1342
    %v1344 = vrot.slane %v1335, %v1343
    %v1346 = vunpack.c.l.s4 1983009808
    %v1347 = vunpack.c.0.s8 %v1346
    %v1348 = vlaneseq
    %v1349 = vshrl.u32 %v1348, 7
    %v1350 = vsub.s32 %v1347, %v1349
    %v1351 = vrot.slane %v1337, %v1350
    %v1352 = vcombine.high %v1344, %v1344
    %v1356 = vadd.f32 %v1228, %v1344
    %v1357 = vadd.f32 %v1229, %v1352
    %v1358 = vadd.f32 %v1230, %v1351
    %s1359 = sld [smem:[#allocation3 + $0x4a]]
    %v1360 = vstv %s1359
    %v1361 = vmul.f32 %v1360, %v1039
    %v1363 = vcombine.high %v1361, %v1361
    %v1365 = vunpack.c.l.s4 1983009808
    %v1366 = vunpack.c.0.s8 %v1365
    %v1367 = vlaneseq
    %v1368 = vshrl.u32 %v1367, 7
    %v1369 = vsub.s32 %v1366, %v1368
    %v1370 = vrot.slane %v1361, %v1369
    %v1372 = vunpack.c.l.s4 1983009808
    %v1373 = vunpack.c.0.s8 %v1372
    %v1374 = vlaneseq
    %v1375 = vshrl.u32 %v1374, 7
    %v1376 = vsub.s32 %v1373, %v1375
    %v1377 = vrot.slane %v1363, %v1376
    %v1378 = vcombine.high %v1370, %v1370
    %v1382 = vadd.f32 %v1236, %v1370
    %v1383 = vadd.f32 %v1237, %v1378
    %v1384 = vadd.f32 %v1238, %v1377
    %s1385 = sld [smem:[#allocation3 + $0x4b]]
    %v1386 = vstv %s1385
    %v1387 = vmul.f32 %v1386, %v1039
    %v1389 = vcombine.high %v1387, %v1387
    %v1391 = vunpack.c.l.s4 1983009808
    %v1392 = vunpack.c.0.s8 %v1391
    %v1393 = vlaneseq
    %v1394 = vshrl.u32 %v1393, 7
    %v1395 = vsub.s32 %v1392, %v1394
    %v1396 = vrot.slane %v1387, %v1395
    %v1398 = vunpack.c.l.s4 1983009808
    %v1399 = vunpack.c.0.s8 %v1398
    %v1400 = vlaneseq
    %v1401 = vshrl.u32 %v1400, 7
    %v1402 = vsub.s32 %v1399, %v1401
    %v1403 = vrot.slane %v1389, %v1402
    %v1404 = vcombine.high %v1396, %v1396
    %v1408 = vadd.f32 %v1244, %v1396
    %v1409 = vadd.f32 %v1245, %v1404
    %v1410 = vadd.f32 %v1246, %v1403
    %s1411 = sld [smem:[#allocation3 + $0x4c]]
    %v1412 = vstv %s1411
    %v1413 = vmul.f32 %v1412, %v1039
    %v1415 = vcombine.high %v1413, %v1413
    %v1417 = vunpack.c.l.s4 1983009808
    %v1418 = vunpack.c.0.s8 %v1417
    %v1419 = vlaneseq
    %v1420 = vshrl.u32 %v1419, 7
    %v1421 = vsub.s32 %v1418, %v1420
    %v1422 = vrot.slane %v1413, %v1421
    %v1424 = vunpack.c.l.s4 1983009808
    %v1425 = vunpack.c.0.s8 %v1424
    %v1426 = vlaneseq
    %v1427 = vshrl.u32 %v1426, 7
    %v1428 = vsub.s32 %v1425, %v1427
    %v1429 = vrot.slane %v1415, %v1428
    %v1430 = vcombine.high %v1422, %v1422
    %v1434 = vadd.f32 %v1252, %v1422
    %v1435 = vadd.f32 %v1253, %v1430
    %v1436 = vadd.f32 %v1254, %v1429
    %1437 = vrot.lane.b32.xlu0 %v1048, 109
    %v1438 = vpop.permute.xlu0 %1437
    %1439 = vrot.lane.b32.xlu0 %v1056, 109
    %v1440 = vpop.permute.xlu0 %1439
    %1441 = vrot.lane.b32.xlu0 %v1055, 109
    %v1442 = vpop.permute.xlu0 %1441
    %v1443 = vsel %vm847, %v1440, %v1442
    %v1444 = vsel %vm847, %v1438, %v1440
    %v1445 = vsel %vm847, %v1442, %v1438
    %s1446 = sld [smem:[#allocation3 + $0x4d]]
    %v1447 = vstv %s1446
    %v1448 = vmul.f32 %v1447, %v1444
    %v1449 = vmul.f32 %v1447, %v1443
    %v1450 = vmul.f32 %v1447, %v1445
    %v1451 = vadd.f32 %v1278, %v1448
    %v1452 = vadd.f32 %v1279, %v1449
    %v1453 = vadd.f32 %v1280, %v1450
    %s1454 = sld [smem:[#allocation3 + $0x4e]]
    %v1455 = vstv %s1454
    %v1456 = vmul.f32 %v1455, %v1444
    %v1457 = vmul.f32 %v1455, %v1443
    %v1458 = vmul.f32 %v1455, %v1445
    %v1459 = vadd.f32 %v1304, %v1456
    %v1460 = vadd.f32 %v1305, %v1457
    %v1461 = vadd.f32 %v1306, %v1458
    %s1462 = sld [smem:[#allocation3 + $0x4f]]
    %v1463 = vstv %s1462
    %v1464 = vmul.f32 %v1463, %v1444
    %v1465 = vmul.f32 %v1463, %v1443
    %v1466 = vmul.f32 %v1463, %v1445
    %v1467 = vadd.f32 %v1330, %v1464
    %v1468 = vadd.f32 %v1331, %v1465
    %v1469 = vadd.f32 %v1332, %v1466
    %s1470 = sld [smem:[#allocation3 + $0x50]]
    %v1471 = vstv %s1470
    %v1472 = vmul.f32 %v1471, %v1444
    %v1473 = vmul.f32 %v1471, %v1443
    %v1474 = vmul.f32 %v1471, %v1445
    %v1475 = vadd.f32 %v1356, %v1472
    %v1476 = vadd.f32 %v1357, %v1473
    %v1477 = vadd.f32 %v1358, %v1474
    %s1478 = sld [smem:[#allocation3 + $0x51]]
    %v1479 = vstv %s1478
    %v1480 = vmul.f32 %v1479, %v1444
    %v1481 = vmul.f32 %v1479, %v1443
    %v1482 = vmul.f32 %v1479, %v1445
    %v1483 = vadd.f32 %v1382, %v1480
    %v1484 = vadd.f32 %v1383, %v1481
    %v1485 = vadd.f32 %v1384, %v1482
    %s1486 = sld [smem:[#allocation3 + $0x52]]
    %v1487 = vstv %s1486
    %v1488 = vmul.f32 %v1487, %v1444
    %v1489 = vmul.f32 %v1487, %v1443
    %v1490 = vmul.f32 %v1487, %v1445
    %v1491 = vadd.f32 %v1408, %v1488
    %v1492 = vadd.f32 %v1409, %v1489
    %v1493 = vadd.f32 %v1410, %v1490
    %s1494 = sld [smem:[#allocation3 + $0x53]]
    %v1495 = vstv %s1494
    %v1496 = vmul.f32 %v1495, %v1444
    %v1497 = vmul.f32 %v1495, %v1443
    %v1498 = vmul.f32 %v1495, %v1445
    %v1499 = vadd.f32 %v1434, %v1496
    %v1500 = vadd.f32 %v1435, %v1497
    %v1501 = vadd.f32 %v1436, %v1498
    %1502 = vrot.lane.b32.xlu0 %v1048, 90
    %v1503 = vpop.permute.xlu0 %1502
    %1504 = vrot.lane.b32.xlu0 %v1056, 90
    %v1505 = vpop.permute.xlu0 %1504
    %1506 = vrot.lane.b32.xlu0 %v1055, 90
    %v1507 = vpop.permute.xlu0 %1506
    %v1508 = vsel %vm913, %v1505, %v1507
    %v1509 = vsel %vm913, %v1503, %v1505
    %v1510 = vsel %vm913, %v1507, %v1503
    %s1511 = sld [smem:[#allocation3 + $0x54]]
    %v1512 = vstv %s1511
    %v1513 = vmul.f32 %v1512, %v1509
    %v1514 = vmul.f32 %v1512, %v1508
    %v1515 = vmul.f32 %v1512, %v1510
    %v1516 = vadd.f32 %v1451, %v1513
    %v1517 = vadd.f32 %v1452, %v1514
    %v1518 = vadd.f32 %v1453, %v1515
    %s1519 = sld [smem:[#allocation3 + $0x55]]
    %v1520 = vstv %s1519
    %v1521 = vmul.f32 %v1520, %v1509
    %v1522 = vmul.f32 %v1520, %v1508
    %v1523 = vmul.f32 %v1520, %v1510
    %v1524 = vadd.f32 %v1459, %v1521
    %v1525 = vadd.f32 %v1460, %v1522
    %v1526 = vadd.f32 %v1461, %v1523
    %s1527 = sld [smem:[#allocation3 + $0x56]]
    %v1528 = vstv %s1527
    %v1529 = vmul.f32 %v1528, %v1509
    %v1530 = vmul.f32 %v1528, %v1508
    %v1531 = vmul.f32 %v1528, %v1510
    %v1532 = vadd.f32 %v1467, %v1529
    %v1533 = vadd.f32 %v1468, %v1530
    %v1534 = vadd.f32 %v1469, %v1531
    %s1535 = sld [smem:[#allocation3 + $0x57]]
    %v1536 = vstv %s1535
    %v1537 = vmul.f32 %v1536, %v1509
    %v1538 = vmul.f32 %v1536, %v1508
    %v1539 = vmul.f32 %v1536, %v1510
    %v1540 = vadd.f32 %v1475, %v1537
    %v1541 = vadd.f32 %v1476, %v1538
    %v1542 = vadd.f32 %v1477, %v1539
    %s1543 = sld [smem:[#allocation3 + $0x58]]
    %v1544 = vstv %s1543
    %v1545 = vmul.f32 %v1544, %v1509
    %v1546 = vmul.f32 %v1544, %v1508
    %v1547 = vmul.f32 %v1544, %v1510
    %v1548 = vadd.f32 %v1483, %v1545
    %v1549 = vadd.f32 %v1484, %v1546
    %v1550 = vadd.f32 %v1485, %v1547
    %s1551 = sld [smem:[#allocation3 + $0x59]]
    %v1552 = vstv %s1551
    %v1553 = vmul.f32 %v1552, %v1509
    %v1554 = vmul.f32 %v1552, %v1508
    %v1555 = vmul.f32 %v1552, %v1510
    %v1556 = vadd.f32 %v1491, %v1553
    %v1557 = vadd.f32 %v1492, %v1554
    %v1558 = vadd.f32 %v1493, %v1555
    %s1559 = sld [smem:[#allocation3 + $0x5a]]
    %v1560 = vstv %s1559
    %v1561 = vmul.f32 %v1560, %v1509
    %v1562 = vmul.f32 %v1560, %v1508
    %v1563 = vmul.f32 %v1560, %v1510
    %v1564 = vadd.f32 %v1499, %v1561
    %v1565 = vadd.f32 %v1500, %v1562
    %v1566 = vadd.f32 %v1501, %v1563
    %1567 = vrot.lane.b32.xlu0 %v1048, 71
    %v1568 = vpop.permute.xlu0 %1567
    %1569 = vrot.lane.b32.xlu0 %v1056, 71
    %v1570 = vpop.permute.xlu0 %1569
    %1571 = vrot.lane.b32.xlu0 %v1055, 71
    %v1572 = vpop.permute.xlu0 %1571
    %v1573 = vsel %vm979, %v1570, %v1572
    %v1574 = vsel %vm979, %v1568, %v1570
    %v1575 = vsel %vm979, %v1572, %v1568
    %s1576 = sld [smem:[#allocation3 + $0x5b]]
    %v1577 = vstv %s1576
    %v1578 = vmul.f32 %v1577, %v1574
    %v1579 = vmul.f32 %v1577, %v1573
    %v1580 = vmul.f32 %v1577, %v1575
    %v1581 = vadd.f32 %v1516, %v1578
    %v1582 = vadd.f32 %v1517, %v1579
    %v1583 = vadd.f32 %v1518, %v1580
    %s1584 = sld [smem:[#allocation3 + $0x5c]]
    %v1585 = vstv %s1584
    %v1586 = vmul.f32 %v1585, %v1574
    %v1587 = vmul.f32 %v1585, %v1573
    %v1588 = vmul.f32 %v1585, %v1575
    %v1589 = vadd.f32 %v1524, %v1586
    %v1590 = vadd.f32 %v1525, %v1587
    %v1591 = vadd.f32 %v1526, %v1588
    %s1592 = sld [smem:[#allocation3 + $0x5d]]
    %v1593 = vstv %s1592
    %v1594 = vmul.f32 %v1593, %v1574
    %v1595 = vmul.f32 %v1593, %v1573
    %v1596 = vmul.f32 %v1593, %v1575
    %v1597 = vadd.f32 %v1532, %v1594
    %v1598 = vadd.f32 %v1533, %v1595
    %v1599 = vadd.f32 %v1534, %v1596
    %s1600 = sld [smem:[#allocation3 + $0x5e]]
    %v1601 = vstv %s1600
    %v1602 = vmul.f32 %v1601, %v1574
    %v1603 = vmul.f32 %v1601, %v1573
    %v1604 = vmul.f32 %v1601, %v1575
    %v1605 = vadd.f32 %v1540, %v1602
    %v1606 = vadd.f32 %v1541, %v1603
    %v1607 = vadd.f32 %v1542, %v1604
    %s1608 = sld [smem:[#allocation3 + $0x5f]]
    %v1609 = vstv %s1608
    %v1610 = vmul.f32 %v1609, %v1574
    %v1611 = vmul.f32 %v1609, %v1573
    %v1612 = vmul.f32 %v1609, %v1575
    %v1613 = vadd.f32 %v1548, %v1610
    %v1614 = vadd.f32 %v1549, %v1611
    %v1615 = vadd.f32 %v1550, %v1612
    %s1616 = sld [smem:[#allocation3 + $0x60]]
    %v1617 = vstv %s1616
    %v1618 = vmul.f32 %v1617, %v1574
    %v1619 = vmul.f32 %v1617, %v1573
    %v1620 = vmul.f32 %v1617, %v1575
    %v1621 = vadd.f32 %v1556, %v1618
    %v1622 = vadd.f32 %v1557, %v1619
    %v1623 = vadd.f32 %v1558, %v1620
    %s1624 = sld [smem:[#allocation3 + $0x61]]
    %v1625 = vstv %s1624
    %v1626 = vmul.f32 %v1625, %v1574
    %v1627 = vmul.f32 %v1625, %v1573
    %v1628 = vmul.f32 %v1625, %v1575
    %v1629 = vadd.f32 %v1564, %v1626
    %v1630 = vadd.f32 %v1565, %v1627
    %v1631 = vadd.f32 %v1566, %v1628
    %1632 = vrot.lane.b32.xlu0 %v1581, 3
    %v1633 = vpop.permute.xlu0 %1632
    %1634 = vrot.lane.b32.xlu0 %v1582, 3
    %v1635 = vpop.permute.xlu0 %1634
    %1636 = vrot.lane.b32.xlu0 %v1583, 3
    %v1637 = vpop.permute.xlu0 %1636
    %vm1638 = vcmp.lt.s32.totalorder %v487, 3
    %v1639 = vsel %vm1638, %v1635, %v1637
    %v1640 = vsel %vm1638, %v1633, %v1635
    %v1641 = vsel %vm1638, %v1637, %v1633
    %1642 = vrot.lane.b32.xlu0 %v1589, 2
    %v1643 = vpop.permute.xlu0 %1642
    %1644 = vrot.lane.b32.xlu0 %v1590, 2
    %v1645 = vpop.permute.xlu0 %1644
    %1646 = vrot.lane.b32.xlu0 %v1591, 2
    %v1647 = vpop.permute.xlu0 %1646
    %vm1648 = vcmp.lt.s32.totalorder %v487, 2
    %v1649 = vsel %vm1648, %v1645, %v1647
    %v1650 = vsel %vm1648, %v1643, %v1645
    %v1651 = vsel %vm1648, %v1647, %v1643
    %v1652 = vadd.f32 %v1641, %v1651
    %v1653 = vadd.f32 %v1640, %v1650
    %v1654 = vadd.f32 %v1639, %v1649
    %1655 = vrot.lane.b32.xlu0 %v1597, 1
    %v1656 = vpop.permute.xlu0 %1655
    %1657 = vrot.lane.b32.xlu0 %v1598, 1
    %v1658 = vpop.permute.xlu0 %1657
    %1659 = vrot.lane.b32.xlu0 %v1599, 1
    %v1660 = vpop.permute.xlu0 %1659
    %vm1661 = vcmp.lt.s32.totalorder %v487, 1
    %v1662 = vsel %vm1661, %v1658, %v1660
    %v1663 = vsel %vm1661, %v1656, %v1658
    %v1664 = vsel %vm1661, %v1660, %v1656
    %v1665 = vadd.f32 %v1652, %v1664
    %v1666 = vadd.f32 %v1653, %v1663
    %v1667 = vadd.f32 %v1654, %v1662
    %v1668 = vadd.f32 %v1665, %v1605
    %v1669 = vadd.f32 %v1666, %v1606
    %v1670 = vadd.f32 %v1667, %v1607
    %1671 = vrot.lane.b32.xlu0 %v1613, 127
    %v1672 = vpop.permute.xlu0 %1671
    %1673 = vrot.lane.b32.xlu0 %v1614, 127
    %v1674 = vpop.permute.xlu0 %1673
    %1675 = vrot.lane.b32.xlu0 %v1615, 127
    %v1676 = vpop.permute.xlu0 %1675
    %vm1677 = vcmp.lt.s32.totalorder %v487, 127
    %v1678 = vsel %vm1677, %v1674, %v1676
    %v1679 = vsel %vm1677, %v1672, %v1674
    %v1680 = vsel %vm1677, %v1676, %v1672
    %v1681 = vadd.f32 %v1668, %v1679
    %v1682 = vadd.f32 %v1669, %v1678
    %v1683 = vadd.f32 %v1670, %v1680
    %1684 = vrot.lane.b32.xlu0 %v1621, 126
    %v1685 = vpop.permute.xlu0 %1684
    %1686 = vrot.lane.b32.xlu0 %v1622, 126
    %v1687 = vpop.permute.xlu0 %1686
    %1688 = vrot.lane.b32.xlu0 %v1623, 126
    %v1689 = vpop.permute.xlu0 %1688
    %vm1690 = vcmp.lt.s32.totalorder %v487, 126
    %v1691 = vsel %vm1690, %v1687, %v1689
    %v1692 = vsel %vm1690, %v1685, %v1687
    %v1693 = vsel %vm1690, %v1689, %v1685
    %v1694 = vadd.f32 %v1681, %v1692
    %v1695 = vadd.f32 %v1682, %v1691
    %v1696 = vadd.f32 %v1683, %v1693
    %1697 = vrot.lane.b32.xlu0 %v1629, 125
    %v1698 = vpop.permute.xlu0 %1697
    %1699 = vrot.lane.b32.xlu0 %v1630, 125
    %v1700 = vpop.permute.xlu0 %1699
    %1701 = vrot.lane.b32.xlu0 %v1631, 125
    %v1702 = vpop.permute.xlu0 %1701
    %vm1703 = vcmp.lt.s32.totalorder %v487, 125
    %v1704 = vsel %vm1703, %v1700, %v1702
    %v1705 = vsel %vm1703, %v1698, %v1700
    %v1706 = vsel %vm1703, %v1702, %v1698
    %v1707 = vadd.f32 %v1694, %v1705
    %v1708 = vadd.f32 %v1695, %v1704
    %v1709 = vadd.f32 %v1696, %v1706
    %1711 = vrot.lane.b32.xlu0 %v1707, 125
    %v1712 = vpop.permute.xlu0 %1711
    %1714 = vrot.lane.b32.xlu0 %v1707, 122
    %v1715 = vpop.permute.xlu0 %1714
    %1717 = vrot.lane.b32.xlu0 %v1707, 119
    %v1718 = vpop.permute.xlu0 %1717
    %1720 = vrot.lane.b32.xlu0 %v1707, 116
    %v1721 = vpop.permute.xlu0 %1720
    %1723 = vrot.lane.b32.xlu0 %v1707, 113
    %v1724 = vpop.permute.xlu0 %1723
    %1727 = vrot.lane.b32.xlu0 %v1707, 110
    %v1728 = vpop.permute.xlu0 %1727
    %1729 = vrot.lane.b32.xlu0 %v1708, 110
    %v1730 = vpop.permute.xlu0 %1729
    %vm1731 = vcmask 900096
    %v1732 = vsel %vm1731, %v1728, %v1730
    %1734 = vrot.lane.b32.xlu0 %v1708, 107
    %v1735 = vpop.permute.xlu0 %1734
    %1737 = vrot.lane.b32.xlu0 %v1708, 104
    %v1738 = vpop.permute.xlu0 %1737
    %1740 = vrot.lane.b32.xlu0 %v1708, 101
    %v1741 = vpop.permute.xlu0 %1740
    %1743 = vrot.lane.b32.xlu0 %v1708, 98
    %v1744 = vpop.permute.xlu0 %1743
    %1746 = vrot.lane.b32.xlu0 %v1708, 95
    %v1747 = vpop.permute.xlu0 %1746
    %1749 = vrot.lane.b32.xlu0 %v1708, 92
    %v1750 = vpop.permute.xlu0 %1749
    %1753 = vrot.lane.b32.xlu0 %v1708, 89
    %v1754 = vpop.permute.xlu0 %1753
    %1755 = vrot.lane.b32.xlu0 %v1709, 89
    %v1756 = vpop.permute.xlu0 %1755
    %vm1757 = vcmask 728064
    %v1758 = vsel %vm1757, %v1754, %v1756
    %1760 = vrot.lane.b32.xlu0 %v1709, 86
    %v1761 = vpop.permute.xlu0 %1760
    %1763 = vrot.lane.b32.xlu0 %v1709, 83
    %v1764 = vpop.permute.xlu0 %1763
    %vm1766 = vcmask 130048
    %v1767 = vsel %vm1766, %v1707, %v1712
    %vm1768 = vcmask 261120
    %v1769 = vsel %vm1768, %v1767, %v1715
    %vm1770 = vcmask 392192
    %v1771 = vsel %vm1770, %v1769, %v1718
    %vm1772 = vcmask 523264
    %v1773 = vsel %vm1772, %v1771, %v1721
    %vm1774 = vcmask 654336
    %v1775 = vsel %vm1774, %v1773, %v1724
    %vm1776 = vcmask 785408
    %v1777 = vsel %vm1776, %v1775, %v1732
    %vm1778 = vcmask 916480
    %v1779 = vsel %vm1778, %v1777, %v1735
    %v1780 = vsel %vm1766, %v1738, %v1741
    %v1781 = vsel %vm1768, %v1780, %v1744
    %v1782 = vsel %vm1770, %v1781, %v1747
    %v1783 = vsel %vm1772, %v1782, %v1750
    %v1784 = vsel %vm1774, %v1783, %v1758
    %v1785 = vsel %vm1776, %v1784, %v1761
    %v1786 = vsel %vm1778, %v1785, %v1764
    %v1787 = vxor.u32 %v1779, 2147483648
    %v1788 = vxor.u32 %v1786, 2147483648
    %v1789 = vmul.f32 %v1787, 1.442695
    %v1790 = vpow.pop %v1789
    %v1791 = vmul.f32 %v1788, 1.442695
    %v1792 = vpow.pop %v1791
    %v1793 = vadd.f32 %v1790, 1.0
    %v1794 = vadd.f32 %v1792, 1.0
    %v1795 = vrcp.pop %v1793
    %v1796 = vmul.f32 1.0, %v1795
    %v1797 = vrcp.pop %v1794
    %v1798 = vmul.f32 1.0, %v1797
    %v1799 = vld [vmem:[#allocation7] ss:$4 sm:$0x3]
    %v1800 = vld [vmem:[%s40] ss:$4 sm:$0x3]
    %v1803 = vcombine.low %v1799, %v1800
    %v1805 = vunpack.c.l.s4 1966171168
    %v1806 = vunpack.c.0.s8 %v1805
    %v1807 = vlaneseq
    %v1808 = vshrl.u32 %v1807, 7
    %v1809 = vsub.s32 %v1806, %v1808
    %v1810 = vrot.slane %v1803, %v1809
    %v1811 = vcombine.high %v1810, %v1810
    %v1813 = vunpack.c.l.s4 1966171168
    %v1814 = vunpack.c.0.s8 %v1813
    %v1815 = vlaneseq
    %v1816 = vshrl.u32 %v1815, 7
    %v1817 = vsub.s32 %v1814, %v1816
    %v1818 = vrot.slane %v1810, %v1817
    %v1820 = vunpack.c.l.s4 1966171168
    %v1821 = vunpack.c.0.s8 %v1820
    %v1822 = vlaneseq
    %v1823 = vshrl.u32 %v1822, 7
    %v1824 = vsub.s32 %v1821, %v1823
    %v1825 = vrot.slane %v1811, %v1824
    %v1828 = vmul.f32 %v1796, %v1818
    %v1829 = vmul.f32 %v1798, %v1825
    %v1832 = vcombine.low %v1828, %v1829
    %v1834 = vunpack.c.l.s4 1966171168
    %v1835 = vunpack.c.0.s8 %v1834
    %v1836 = vlaneseq
    %v1837 = vshrl.u32 %v1836, 7
    %v1838 = vsub.s32 %v1835, %v1837
    %v1839 = vrot.slane %v1832, %v1838
    %v1840 = vcombine.high %v1839, %v1839
    %v1842 = vunpack.c.l.s4 1966171168
    %v1843 = vunpack.c.0.s8 %v1842
    %v1844 = vlaneseq
    %v1845 = vshrl.u32 %v1844, 7
    %v1846 = vsub.s32 %v1843, %v1845
    %v1847 = vrot.slane %v1839, %v1846
    %v1849 = vunpack.c.l.s4 1966171168
    %v1850 = vunpack.c.0.s8 %v1849
    %v1851 = vlaneseq
    %v1852 = vshrl.u32 %v1851, 7
    %v1853 = vsub.s32 %v1850, %v1852
    %v1854 = vrot.slane %v1840, %v1853
    %v1857 = vlaneseq
    %vm1858 = vcmp.ge.s32.totalorder %v1857, 0
    %vm1859 = vcmp.lt.s32.totalorder %v1857, 256
    %vm1860 = vmand %vm1858, %vm1859
    %1861 = vst.msk [vmem:[#allocation8] ss:$4 sm:$0x3] %vm1860, %v1847
    %s1862 = scalar_lea.vmem [#allocation8], 8
    %1863 = vst.msk [vmem:[%s1862] ss:$4 sm:$0x3] %vm1860, %v1854
    %v1864 = vld [vmem:[%s42] ss:$4 sm:$0x3]
    %v1865 = vld [vmem:[%s44] ss:$4 sm:$0x3]
    %v1868 = vcombine.low %v1864, %v1865
    %v1870 = vunpack.c.l.s4 1966171168
    %v1871 = vunpack.c.0.s8 %v1870
    %v1872 = vlaneseq
    %v1873 = vshrl.u32 %v1872, 7
    %v1874 = vsub.s32 %v1871, %v1873
    %v1875 = vrot.slane %v1868, %v1874
    %v1876 = vcombine.high %v1875, %v1875
    %v1878 = vunpack.c.l.s4 1966171168
    %v1879 = vunpack.c.0.s8 %v1878
    %v1880 = vlaneseq
    %v1881 = vshrl.u32 %v1880, 7
    %v1882 = vsub.s32 %v1879, %v1881
    %v1883 = vrot.slane %v1875, %v1882
    %v1885 = vunpack.c.l.s4 1966171168
    %v1886 = vunpack.c.0.s8 %v1885
    %v1887 = vlaneseq
    %v1888 = vshrl.u32 %v1887, 7
    %v1889 = vsub.s32 %v1886, %v1888
    %v1890 = vrot.slane %v1876, %v1889
    %v1893 = vmul.f32 %v1796, %v1883
    %v1894 = vmul.f32 %v1798, %v1890
    %v1897 = vcombine.low %v1893, %v1894
    %v1899 = vunpack.c.l.s4 1966171168
    %v1900 = vunpack.c.0.s8 %v1899
    %v1901 = vlaneseq
    %v1902 = vshrl.u32 %v1901, 7
    %v1903 = vsub.s32 %v1900, %v1902
    %v1904 = vrot.slane %v1897, %v1903
    %v1905 = vcombine.high %v1904, %v1904
    %v1907 = vunpack.c.l.s4 1966171168
    %v1908 = vunpack.c.0.s8 %v1907
    %v1909 = vlaneseq
    %v1910 = vshrl.u32 %v1909, 7
    %v1911 = vsub.s32 %v1908, %v1910
    %v1912 = vrot.slane %v1904, %v1911
    %v1914 = vunpack.c.l.s4 1966171168
    %v1915 = vunpack.c.0.s8 %v1914
    %v1916 = vlaneseq
    %v1917 = vshrl.u32 %v1916, 7
    %v1918 = vsub.s32 %v1915, %v1917
    %v1919 = vrot.slane %v1905, %v1918
    %s1922 = scalar_lea.vmem [#allocation8], 1
    %1923 = vst.msk [vmem:[%s1922] ss:$4 sm:$0x3] %vm1860, %v1912
    %s1924 = scalar_lea.vmem [#allocation8], 9
    %1925 = vst.msk [vmem:[%s1924] ss:$4 sm:$0x3] %vm1860, %v1919
    %v1926 = vld [vmem:[%s50] ss:$4 sm:$0x3]
    %v1927 = vld [vmem:[%s52] ss:$4 sm:$0x3]
    %v1930 = vcombine.low %v1926, %v1927
    %v1932 = vunpack.c.l.s4 1966171168
    %v1933 = vunpack.c.0.s8 %v1932
    %v1934 = vlaneseq
    %v1935 = vshrl.u32 %v1934, 7
    %v1936 = vsub.s32 %v1933, %v1935
    %v1937 = vrot.slane %v1930, %v1936
    %v1938 = vcombine.high %v1937, %v1937
    %v1940 = vunpack.c.l.s4 1966171168
    %v1941 = vunpack.c.0.s8 %v1940
    %v1942 = vlaneseq
    %v1943 = vshrl.u32 %v1942, 7
    %v1944 = vsub.s32 %v1941, %v1943
    %v1945 = vrot.slane %v1937, %v1944
    %v1947 = vunpack.c.l.s4 1966171168
    %v1948 = vunpack.c.0.s8 %v1947
    %v1949 = vlaneseq
    %v1950 = vshrl.u32 %v1949, 7
    %v1951 = vsub.s32 %v1948, %v1950
    %v1952 = vrot.slane %v1938, %v1951
    %v1955 = vmul.f32 %v1796, %v1945
    %v1956 = vmul.f32 %v1798, %v1952
    %v1959 = vcombine.low %v1955, %v1956
    %v1961 = vunpack.c.l.s4 1966171168
    %v1962 = vunpack.c.0.s8 %v1961
    %v1963 = vlaneseq
    %v1964 = vshrl.u32 %v1963, 7
    %v1965 = vsub.s32 %v1962, %v1964
    %v1966 = vrot.slane %v1959, %v1965
    %v1967 = vcombine.high %v1966, %v1966
    %v1969 = vunpack.c.l.s4 1966171168
    %v1970 = vunpack.c.0.s8 %v1969
    %v1971 = vlaneseq
    %v1972 = vshrl.u32 %v1971, 7
    %v1973 = vsub.s32 %v1970, %v1972
    %v1974 = vrot.slane %v1966, %v1973
    %v1976 = vunpack.c.l.s4 1966171168
    %v1977 = vunpack.c.0.s8 %v1976
    %v1978 = vlaneseq
    %v1979 = vshrl.u32 %v1978, 7
    %v1980 = vsub.s32 %v1977, %v1979
    %v1981 = vrot.slane %v1967, %v1980
    %s1984 = scalar_lea.vmem [#allocation8], 2
    %1985 = vst.msk [vmem:[%s1984] ss:$4 sm:$0x3] %vm1860, %v1974
    %s1986 = scalar_lea.vmem [#allocation8], 10
    %1987 = vst.msk [vmem:[%s1986] ss:$4 sm:$0x3] %vm1860, %v1981
    %v1988 = vld [vmem:[%s58] ss:$4 sm:$0x3]
    %v1989 = vld [vmem:[%s60] ss:$4 sm:$0x3]
    %v1992 = vcombine.low %v1988, %v1989
    %v1994 = vunpack.c.l.s4 1966171168
    %v1995 = vunpack.c.0.s8 %v1994
    %v1996 = vlaneseq
    %v1997 = vshrl.u32 %v1996, 7
    %v1998 = vsub.s32 %v1995, %v1997
    %v1999 = vrot.slane %v1992, %v1998
    %v2000 = vcombine.high %v1999, %v1999
    %v2002 = vunpack.c.l.s4 1966171168
    %v2003 = vunpack.c.0.s8 %v2002
    %v2004 = vlaneseq
    %v2005 = vshrl.u32 %v2004, 7
    %v2006 = vsub.s32 %v2003, %v2005
    %v2007 = vrot.slane %v1999, %v2006
    %v2009 = vunpack.c.l.s4 1966171168
    %v2010 = vunpack.c.0.s8 %v2009
    %v2011 = vlaneseq
    %v2012 = vshrl.u32 %v2011, 7
    %v2013 = vsub.s32 %v2010, %v2012
    %v2014 = vrot.slane %v2000, %v2013
    %v2017 = vmul.f32 %v1796, %v2007
    %v2018 = vmul.f32 %v1798, %v2014
    %v2021 = vcombine.low %v2017, %v2018
    %v2023 = vunpack.c.l.s4 1966171168
    %v2024 = vunpack.c.0.s8 %v2023
    %v2025 = vlaneseq
    %v2026 = vshrl.u32 %v2025, 7
    %v2027 = vsub.s32 %v2024, %v2026
    %v2028 = vrot.slane %v2021, %v2027
    %v2029 = vcombine.high %v2028, %v2028
    %v2031 = vunpack.c.l.s4 1966171168
    %v2032 = vunpack.c.0.s8 %v2031
    %v2033 = vlaneseq
    %v2034 = vshrl.u32 %v2033, 7
    %v2035 = vsub.s32 %v2032, %v2034
    %v2036 = vrot.slane %v2028, %v2035
    %v2038 = vunpack.c.l.s4 1966171168
    %v2039 = vunpack.c.0.s8 %v2038
    %v2040 = vlaneseq
    %v2041 = vshrl.u32 %v2040, 7
    %v2042 = vsub.s32 %v2039, %v2041
    %v2043 = vrot.slane %v2029, %v2042
    %s2046 = scalar_lea.vmem [#allocation8], 3
    %2047 = vst.msk [vmem:[%s2046] ss:$4 sm:$0x3] %vm1860, %v2036
    %s2048 = scalar_lea.vmem [#allocation8], 11
    %2049 = vst.msk [vmem:[%s2048] ss:$4 sm:$0x3] %vm1860, %v2043
    // Predicated region
    $region18: #{tpu_custom_call.1} parent=1 // pred_check
      _
    $region19: #{tpu_custom_call.1} parent=1 // pred_check_branch
      %2051 = sbr.rel (0) target = $region21
    $region20: #{tpu_custom_call.1} parent=1 // pred_region
      %s2053 = ssub.s32 256, 256
      %2054 = vsyncadd [#allocation5], %s2053
      %s2055 = sshll.u32 [#allocation8], 4
      %s2056 = int_to_ptr.vmem [resolvable:$true] %s2055
      %2061 = dma.vmem_to_hbm [thread:$0]  %s2056, 256, %s2, [#allocation5], 128, 128, 8
    $region21: #{tpu_custom_call.1} parent=1 // pred_fallthru
      _
    // Predicated region
    $region22: #{tpu_custom_call.1} parent=1 // pred_check
      _
    $region23: #{tpu_custom_call.1} parent=1 // pred_check_branch
      %2063 = sbr.rel (0) target = $region25
    $region24: #{tpu_custom_call.1} parent=1 // pred_region
      %2064 = dma.done [#allocation5], 256
    $region25: #{tpu_custom_call.1} parent=1 // pred_fallthru
      _
    %2065 = vsyncpa [#allocation4], 1
    %2066 = vsyncpa [#allocation5], 1
    %2067 = vsyncpa [#allocation6], 1

</llo_original>
